<compile_context>
chip_gen: v5e
topology: v5e:2x2
jax: 0.10.0
libtpu: 0.0.40
codegen_flags: <defaults>
</compile_context>

<pallas_src>
import functools
import math

import jax
import jax.numpy as jnp
from jax import lax
from jax.experimental import pallas as pl
from jax.experimental.pallas import tpu as pltpu

_MASK_NEG = -0.7 * float(jnp.finfo(jnp.float32).max)   # huge but finite (no -inf / NaN rows)


def _detect_vmem_capacity_bytes():
    try:
        info_fn = getattr(pltpu, "get_tpu_info", None)
        if info_fn is not None:
            cap = getattr(info_fn(), "vmem_capacity_bytes", None)
            if cap:
                return int(cap)
    except Exception:
        pass
    return 64 * 1024 * 1024                              # conservative = v7x per-TensorCore


_VMEM_CAP = _detect_vmem_capacity_bytes()
_BIG_VMEM = _VMEM_CAP >= 100 * 1024 * 1024               # v5e / v6e have 128 MiB
_VMEM_LIMIT_BYTES = (96 if _BIG_VMEM else 48) * 1024 * 1024
_GEMM_TM_TARGET = 512 if _BIG_VMEM else 256
_GEMM_TN_TARGET = 512 if _BIG_VMEM else 256
_GEMM_TK_TARGET = 512
_ATTN_ROW_TILE_TARGET = 256                              # group*Q rows per attention grid step
_ATTN_KV_TILE_TARGET = 1024 if _BIG_VMEM else 512


def _sublane_quantum(dtype):
    """Sublane packing quantum: 8 for 4-byte, 16 for 2-byte, 32 for 1-byte dtypes."""
    return {4: 8, 2: 16, 1: 32}.get(jnp.dtype(dtype).itemsize, 8)


def _pick_tile(dim, target, quantum):
    """Largest tile <= target that is a multiple of `quantum` and divides `dim`;
    falls back to the full dimension (always satisfies the TPU block rule)."""
    if dim <= target or dim % quantum != 0:
        return dim
    best = None
    t = quantum
    while t <= target:
        if dim % t == 0:
            best = t
        t += quantum
    return best if best is not None else dim


# ---------------------------------------------------------------------------
# Tiled GEMM:  y = x @ w,   x:(M,K)  w:(K,N)  (weights pre-transposed at load time)
# ---------------------------------------------------------------------------
def _matmul_kernel(x_ref, w_ref, o_ref, acc_ref):
    @pl.when(pl.program_id(2) == 0)
    def _init():
        acc_ref[...] = jnp.zeros_like(acc_ref)

    acc_ref[...] += jnp.dot(x_ref[...], w_ref[...], preferred_element_type=jnp.float32)

    @pl.when(pl.program_id(2) == pl.num_programs(2) - 1)
    def _store():
        o_ref[...] = acc_ref[...].astype(o_ref.dtype)


def matmul(x, w, *, tm_target=None, tn_target=None, tk_target=None):
    tm_target = _GEMM_TM_TARGET if tm_target is None else tm_target
    tn_target = _GEMM_TN_TARGET if tn_target is None else tn_target
    tk_target = _GEMM_TK_TARGET if tk_target is None else tk_target

    M, K = x.shape
    K2, N = w.shape
    assert K == K2

    m_quant = _sublane_quantum(x.dtype)
    Mp = ((M + m_quant - 1) // m_quant) * m_quant        # pad rows instead of odd blocks
    if Mp != M:
        x = jnp.pad(x, ((0, Mp - M), (0, 0)))

    tm = _pick_tile(Mp, tm_target, m_quant)
    tn = _pick_tile(N, tn_target, 128)
    tk = _pick_tile(K, tk_target, 128)

    itemsize = jnp.dtype(x.dtype).itemsize
    cost = pl.CostEstimate(
        flops=int(2 * Mp * N * K),
        transcendentals=0,
        bytes_accessed=int((Mp * K + K * N + Mp * N) * itemsize))

    out = pl.pallas_call(
        _matmul_kernel,
        out_shape=jax.ShapeDtypeStruct((Mp, N), x.dtype),
        grid_spec=pltpu.PrefetchScalarGridSpec(
            num_scalar_prefetch=0,
            grid=(Mp // tm, N // tn, K // tk),
            in_specs=[
                pl.BlockSpec((tm, tk), lambda i, j, k: (i, k)),
                pl.BlockSpec((tk, tn), lambda i, j, k: (k, j)),
            ],
            out_specs=pl.BlockSpec((tm, tn), lambda i, j, k: (i, j)),
            scratch_shapes=[pltpu.VMEM((tm, tn), jnp.float32)],
        ),
        compiler_params=pltpu.CompilerParams(
            dimension_semantics=("parallel", "parallel", "arbitrary"),
            vmem_limit_bytes=_VMEM_LIMIT_BYTES,
        ),
        cost_estimate=cost,
    )(x, w)
    return out[:M] if Mp != M else out


# ---------------------------------------------------------------------------
# GQA attention kernel: grid = (batch, kv_head, row_tile, kv_tile).
# q is pre-stacked by the wrapper to (B, KVH, group*Q, D); one grid step handles one
# row tile of one kv head against one KV tile with flash-style online softmax.
# ---------------------------------------------------------------------------
def _gqa_attention_kernel(*refs, head_dim, has_mask):
    if has_mask:
        q_ref, kv_ref, mask_ref, o_ref, m_sc, l_sc, acc_sc = refs
    else:
        q_ref, kv_ref, o_ref, m_sc, l_sc, acc_sc = refs

    t = pl.program_id(3)

    @pl.when(t == 0)
    def _init():
        m_sc[...] = jnp.full_like(m_sc, -jnp.inf)
        l_sc[...] = jnp.zeros_like(l_sc)
        acc_sc[...] = jnp.zeros_like(acc_sc)

    q = q_ref[0, 0]                        # (r_tile, D) — already head-stacked by the wrapper
    k = kv_ref[0, :, :head_dim]            # (kv_tile, D)   interleaved [k_h | v_h] block
    v = kv_ref[0, :, head_dim:]            # (kv_tile, D)

    # QK^T on the MXU in the operands' native dtype; 1/sqrt(D) is folded into wq.
    s = lax.dot_general(q, k, (((1,), (1,)), ((), ())),
                        preferred_element_type=jnp.float32)   # (r_tile, kv_tile) f32
    if has_mask:
        s = s + mask_ref[0]                # (1, kv_tile) additive key mask (broadcast rows)

    m_prev = m_sc[...]
    m_new = jnp.maximum(m_prev, jnp.max(s, axis=-1, keepdims=True))
    alpha = jnp.exp(m_prev - m_new)        # EUP
    p = jnp.exp(s - m_new)                 # EUP, f32
    l_sc[...] = alpha * l_sc[...] + jnp.sum(p, axis=-1, keepdims=True)
    acc_sc[...] = alpha * acc_sc[...] + jnp.dot(
        p.astype(v.dtype), v, preferred_element_type=jnp.float32)
    m_sc[...] = m_new

    @pl.when(t == pl.num_programs(3) - 1)
    def _finalize():
        # Single contiguous lane-dense block store; runs once per (b, kvh, row tile).
        o_ref[0, 0] = (acc_sc[...] / l_sc[...]).astype(o_ref.dtype)


def gqa_attention(q_bhrd, kv_bsf, add_mask, *, head_dim,
                  row_tile_target=None, kv_tile_target=None):
    """q_bhrd:   (B, KVH, group*Q, D)  queries, pre-stacked per kv head (scale folded in)
       kv_bsf:   (B, KV, KVH*2*D)      fused projection, per-head interleaved [k_h | v_h]
       add_mask: None or (B, 1, KV) additive f32 key mask
       returns   (B, KVH, group*Q, D) attention output in the same layout."""
    row_tile_target = _ATTN_ROW_TILE_TARGET if row_tile_target is None else row_tile_target
    kv_tile_target = _ATTN_KV_TILE_TARGET if kv_tile_target is None else kv_tile_target

    B, KVH, R, D = q_bhrd.shape
    Bkv, KV, F = kv_bsf.shape
    assert Bkv == B and D == head_dim and F == KVH * 2 * head_dim
    assert head_dim % 128 == 0, "head_dim must be a multiple of 128 for lane-aligned blocks"
    # TODO(synk): head_dim=64 models would need head packing or masked lane stores.

    r_tile = _pick_tile(R, row_tile_target, _sublane_quantum(q_bhrd.dtype))
    kv_tile = _pick_tile(KV, kv_tile_target, 128)

    has_mask = add_mask is not None
    kernel = functools.partial(_gqa_attention_kernel, head_dim=head_dim, has_mask=has_mask)

    in_specs = [
        # q rows for this (batch, kv head, row tile); resident across the KV-tile axis
        pl.BlockSpec((1, 1, r_tile, D), lambda b, h, r, t: (b, h, r, 0)),
        # one DMA stream delivers both K and V (interleaved per kv head, 2*D lanes)
        pl.BlockSpec((1, kv_tile, 2 * D), lambda b, h, r, t: (b, t, h)),
    ]
    inputs = [q_bhrd, kv_bsf]
    if has_mask:
        in_specs.append(pl.BlockSpec((1, 1, kv_tile), lambda b, h, r, t: (b, 0, t)))
        inputs.append(add_mask)

    itemsize = jnp.dtype(q_bhrd.dtype).itemsize
    cost = pl.CostEstimate(
        flops=int(4 * B * KVH * R * KV * D),
        transcendentals=int(B * KVH * R * KV),
        bytes_accessed=int(itemsize * (2 * B * KVH * R * D + (R // r_tile) * B * KV * F)
                           + (4 * B * KV if has_mask else 0)))

    return pl.pallas_call(
        kernel,
        out_shape=jax.ShapeDtypeStruct((B, KVH, R, D), q_bhrd.dtype),
        grid_spec=pltpu.PrefetchScalarGridSpec(
            num_scalar_prefetch=0,
            grid=(B, KVH, R // r_tile, KV // kv_tile),
            in_specs=in_specs,
            out_specs=pl.BlockSpec((1, 1, r_tile, D), lambda b, h, r, t: (b, h, r, 0)),
            scratch_shapes=[
                pltpu.VMEM((r_tile, 1), jnp.float32),    # running max
                pltpu.VMEM((r_tile, 1), jnp.float32),    # running denominator
                pltpu.VMEM((r_tile, D), jnp.float32),    # output accumulator
            ],
        ),
        compiler_params=pltpu.CompilerParams(
            dimension_semantics=("parallel", "parallel", "parallel", "arbitrary"),
            vmem_limit_bytes=_VMEM_LIMIT_BYTES,
        ),
        cost_estimate=cost,
    )(*inputs)


# ---------------------------------------------------------------------------
# One-time parameter re-layout + mask preparation + forward glue
# ---------------------------------------------------------------------------
def prepare_gqa_params(torch_layout_params, *, num_heads, num_kv_heads, head_dim,
                       param_dtype=jnp.bfloat16):
    """One-time transform of PyTorch nn.Linear weights ((out, in) layout):
       * pre-transpose to (K, N) so the GEMM contracts the leading weight axis,
       * fold 1/sqrt(head_dim) into the q projection,
       * permute q_proj output heads / o_proj input heads to kv-group-major order
         (new head h' = kvh*G + g  <->  original head h = g*KVH + kvh),
       * fuse k_proj/v_proj into one matrix, interleaved per kv head [k_h | v_h],
       * cast to `param_dtype` (bf16 by default for MXU throughput)."""
    G = num_heads // num_kv_heads
    wq = torch_layout_params["q_proj"]            # (H*D, E)
    wk = torch_layout_params["k_proj"]            # (KVH*D, E)
    wv = torch_layout_params["v_proj"]            # (KVH*D, E)
    wo = torch_layout_params["o_proj"]            # (E, H*D)
    E = wq.shape[1]
    scale = 1.0 / math.sqrt(head_dim)

    wq_perm = wq.reshape(G, num_kv_heads, head_dim, E).transpose(1, 0, 2, 3)
    wq_perm = wq_perm.reshape(num_heads * head_dim, E) * scale

    wk_r = wk.reshape(num_kv_heads, 1, head_dim, E)
    wv_r = wv.reshape(num_kv_heads, 1, head_dim, E)
    wkv = jnp.concatenate([wk_r, wv_r], axis=1).reshape(2 * num_kv_heads * head_dim, E)

    wo_perm = wo.reshape(E, G, num_kv_heads, head_dim).transpose(0, 2, 1, 3)
    wo_perm = wo_perm.reshape(E, num_heads * head_dim)

    return {
        "wq_t": jnp.transpose(wq_perm).astype(param_dtype),   # (E, H*D), permuted + pre-scaled
        "wkv_t": jnp.transpose(wkv).astype(param_dtype),      # (E, KVH*2*D), [k_h | v_h] per head
        "wo_t": jnp.transpose(wo_perm).astype(param_dtype),   # (H*D, E), rows in permuted order
    }


def prepare_additive_mask(attention_mask, batch, kv_len):
    """None -> None (kernel skips the mask path).  (B, KV) bool/int/float mask ->
    compact (B, 1, KV) additive f32 mask.  bool True => masked out; numeric 1 => attend."""
    if attention_mask is None:
        return None
    m = attention_mask
    if m.ndim != 2:
        # TODO(synk): pre-shaped (B,1,Q,KV) masks are not plumbed through this kernel;
        # only None / 2-D key padding masks (the common case) are supported.
        raise NotImplementedError("only None or 2-D (batch, kv_len) masks are supported")
    if m.dtype == jnp.bool_:
        add = jnp.where(m, _MASK_NEG, 0.0).astype(jnp.float32)
    else:
        add = ((1.0 - m.astype(jnp.float32)) * _MASK_NEG).astype(jnp.float32)
    return add.reshape(batch, 1, kv_len)


def gqa_forward(prepared, query_states, key_value_states, attention_mask,
                *, num_heads, num_kv_heads):
    """Eval-mode forward (dropout_p = 0; apply_rope_to_q = apply_rope_to_k = False)."""
    B, Q, E = query_states.shape
    Bkv, KV, _ = key_value_states.shape
    assert Bkv == B
    head_dim = E // num_heads
    G = num_heads // num_kv_heads
    compute_dtype = prepared["wq_t"].dtype

    xq = query_states.astype(compute_dtype).reshape(B * Q, E)
    xkv = key_value_states.astype(compute_dtype).reshape(B * KV, E)

    # Projections: q from query_states; fused [k;v] from key_value_states (read once).
    q = matmul(xq, prepared["wq_t"])                     # (B*Q, H*D), heads kv-group-major
    kv = matmul(xkv, prepared["wkv_t"])                  # (B*KV, KVH*2*D), [k_h|v_h] blocks

    # TODO(synk): rotary_emb_fn / freqs_cis_q / freqs_cis_k are external callables/args;
    # this instance uses apply_rope_to_q=False and apply_rope_to_k=False, so no RoPE.

    # One wrapper-side relayout so the kernel gets pre-stacked head rows.
    q4 = q.reshape(B, Q, num_kv_heads, G, head_dim).transpose(0, 2, 3, 1, 4)
    q4 = q4.reshape(B, num_kv_heads, G * Q, head_dim)
    kv3 = kv.reshape(B, KV, 2 * num_kv_heads * head_dim)

    add_mask = prepare_additive_mask(attention_mask, B, KV)

    attn = gqa_attention(q4, kv3, add_mask, head_dim=head_dim)   # (B, KVH, G*Q, D)

    # Undo the relayout once before o_proj (feature order stays kv-group-major == wo_t rows).
    attn = attn.reshape(B, num_kv_heads, G, Q, head_dim).transpose(0, 3, 1, 2, 4)
    attn = attn.reshape(B * Q, num_heads * head_dim)

    out = matmul(attn, prepared["wo_t"])
    return out.reshape(B, Q, E).astype(query_states.dtype)


# ---------------------------------------------------------------------------
# Pure-JAX reference with the original module's semantics (for self-check)
# ---------------------------------------------------------------------------
def reference_forward(torch_layout_params, query_states, key_value_states,
                      attention_mask, *, num_heads, num_kv_heads):
    B, Q, E = query_states.shape
    _, KV, _ = key_value_states.shape
    D = E // num_heads
    hp = lambda a, w: jnp.einsum("bse,fe->bsf", a, w, precision="highest")
    q = hp(query_states, torch_layout_params["q_proj"]).reshape(B, Q, num_heads, D)
    k = hp(key_value_states, torch_layout_params["k_proj"]).reshape(B, KV, num_kv_heads, D)
    v = hp(key_value_states, torch_layout_params["v_proj"]).reshape(B, KV, num_kv_heads, D)
    q = q.transpose(0, 2, 1, 3)
    k = k.transpose(0, 2, 1, 3)[:, jnp.arange(num_heads) % num_kv_heads]
    v = v.transpose(0, 2, 1, 3)[:, jnp.arange(num_heads) % num_kv_heads]
    if attention_mask is None:
        add = 0.0
    else:
        m = attention_mask
        if m.ndim == 2:
            m = m[:, None, None, :]
        if m.dtype == jnp.bool_:
            add = jnp.where(m, _MASK_NEG, 0.0)
        else:
            add = (1.0 - m.astype(jnp.float32)) * _MASK_NEG
    s = jnp.einsum("bhqd,bhkd->bhqk", q, k, precision="highest") / math.sqrt(D) + add
    p = jax.nn.softmax(s, axis=-1)
    o = jnp.einsum("bhqk,bhkd->bhqd", p, v, precision="highest")
    o = o.transpose(0, 2, 1, 3).reshape(B, Q, num_heads * D)
    return jnp.einsum("bsf,ef->bse", o, torch_layout_params["o_proj"], precision="highest")


# ---------------------------------------------------------------------------
# Main
# ---------------------------------------------------------------------------
if __name__ == "__main__":
    num_heads = 4
    num_kv_heads = 2
    head_dim = 128
    embed_dim = num_heads * head_dim      # 512
    B, Q_LEN, KV_LEN = 2, 8, 8

    key = jax.random.PRNGKey(0)
    k_q, k_k, k_v, k_o, k_x, k_kv = jax.random.split(key, 6)
    init = lambda rk, shape: 0.02 * jax.random.normal(rk, shape, jnp.float32)

    # PyTorch nn.Linear layout: (out_features, in_features), bias=False.
    torch_layout_params = {
        "q_proj": init(k_q, (num_heads * head_dim, embed_dim)),
        "k_proj": init(k_k, (num_kv_heads * head_dim, embed_dim)),
        "v_proj": init(k_v, (num_kv_heads * head_dim, embed_dim)),
        "o_proj": init(k_o, (embed_dim, num_heads * head_dim)),
    }

    query_states = jax.random.normal(k_x, (B, Q_LEN, embed_dim), jnp.float32)
    key_value_states = jax.random.normal(k_kv, (B, KV_LEN, embed_dim), jnp.float32)
    # bool mask, True = mask out (matches masked_fill_ semantics of the module)
    attention_mask = jnp.zeros((B, KV_LEN), jnp.bool_).at[:, -2:].set(True)

    fwd = jax.jit(functools.partial(gqa_forward, num_heads=num_heads,
                                    num_kv_heads=num_kv_heads))

    ref_masked = reference_forward(torch_layout_params, query_states, key_value_states,
                                   attention_mask, num_heads=num_heads,
                                   num_kv_heads=num_kv_heads)

    # 1) bf16 MXU path (primary perf configuration), with key-padding mask.
    prepared_bf16 = prepare_gqa_params(torch_layout_params, num_heads=num_heads,
                                       num_kv_heads=num_kv_heads, head_dim=head_dim,
                                       param_dtype=jnp.bfloat16)
    out_bf16 = fwd(prepared_bf16, query_states, key_value_states, attention_mask)
    jax.block_until_ready(out_bf16)
    assert out_bf16.shape == (B, Q_LEN, embed_dim)
    assert bool(jnp.all(jnp.isfinite(out_bf16)))
    err_bf16 = float(jnp.max(jnp.abs(out_bf16.astype(jnp.float32) - ref_masked)))
    assert bool(jnp.allclose(out_bf16.astype(jnp.float32), ref_masked,
                             atol=5e-2, rtol=5e-2)), f"bf16 max_err={err_bf16}"

    # 2) f32 path, masked (tighter numeric check).
    prepared_f32 = prepare_gqa_params(torch_layout_params, num_heads=num_heads,
                                      num_kv_heads=num_kv_heads, head_dim=head_dim,
                                      param_dtype=jnp.float32)
    out_f32 = fwd(prepared_f32, query_states, key_value_states, attention_mask)
    jax.block_until_ready(out_f32)
    err_f32 = float(jnp.max(jnp.abs(out_f32 - ref_masked)))
    assert bool(jnp.allclose(out_f32, ref_masked, atol=1e-2, rtol=1e-2)), f"f32 max_err={err_f32}"

    # 3) attention_mask=None specialization (no mask DMA / add inside the kernel).
    out_nomask = fwd(prepared_f32, query_states, key_value_states, None)
    jax.block_until_ready(out_nomask)
    ref_nomask = reference_forward(torch_layout_params, query_states, key_value_states,
                                   None, num_heads=num_heads, num_kv_heads=num_kv_heads)
    err_nm = float(jnp.max(jnp.abs(out_nomask - ref_nomask)))
    assert bool(jnp.allclose(out_nomask, ref_nomask, atol=1e-2, rtol=1e-2)), f"nomask max_err={err_nm}"

    print("KERNEL_OK")
</pallas_src>

<mosaic_0001>
module attributes {stable_mosaic.version = 11 : i64} {
  func.func @_matmul_kernel(%arg0: i32, %arg1: i32, %arg2: i32, %arg3: memref<16x512xbf16, #tpu.memory_space<vmem>>, %arg4: memref<512x256xbf16, #tpu.memory_space<vmem>>, %arg5: memref<16x256xbf16, #tpu.memory_space<vmem>>, %arg6: memref<16x256xf32, #tpu.memory_space<vmem>>) attributes {dimension_semantics = [#tpu.dimension_semantics<parallel>, #tpu.dimension_semantics<parallel>, #tpu.dimension_semantics<arbitrary>], iteration_bounds = array<i64: 1, 2, 1>, scalar_prefetch = 0 : i64, scratch_operands = 1 : i64, tpu.core_type = #tpu.core_type<tc>, window_params = [{transform_indices = @transform_0, window_bounds = array<i64: 16, 512>}, {transform_indices = @transform_1, window_bounds = array<i64: 512, 256>}, {transform_indices = @transform_2, window_bounds = array<i64: 16, 256>}]} {
    %c0_i32 = arith.constant 0 : i32
    %0 = arith.cmpi eq, %arg2, %c0_i32 : i32
    %1 = arith.extui %0 : i1 to i32
    %c0_i32_0 = arith.constant 0 : i32
    %2 = arith.cmpi ne, %1, %c0_i32_0 : i32
    scf.if %2 {
      %cst_10 = arith.constant 0.000000e+00 : f32
      %12 = vector.broadcast %cst_10 : f32 to vector<16x256xf32>
      %c0_11 = arith.constant 0 : index
      %c0_12 = arith.constant 0 : index
      %13 = vector.load %arg6[%c0_11, %c0_12] : memref<16x256xf32, #tpu.memory_space<vmem>>, vector<16x256xf32>
      tpu.vector_store %arg6[%c0_11, %c0_12], %12 {strides = array<i32>} : memref<16x256xf32, #tpu.memory_space<vmem>>, vector<16x256xf32>,
    } else {
    }
    %c0 = arith.constant 0 : index
    %c0_1 = arith.constant 0 : index
    %3 = vector.load %arg6[%c0, %c0_1] : memref<16x256xf32, #tpu.memory_space<vmem>>, vector<16x256xf32>
    %c0_2 = arith.constant 0 : index
    %c0_3 = arith.constant 0 : index
    %4 = vector.load %arg3[%c0_2, %c0_3] : memref<16x512xbf16, #tpu.memory_space<vmem>>, vector<16x512xbf16>
    %c0_4 = arith.constant 0 : index
    %c0_5 = arith.constant 0 : index
    %5 = vector.load %arg4[%c0_4, %c0_5] : memref<512x256xbf16, #tpu.memory_space<vmem>>, vector<512x256xbf16>
    %cst = arith.constant dense<0.000000e+00> : vector<16x256xf32>
    %6 = tpu.matmul %4, %5, %cst {dimension_numbers = #tpu.dot_dimension_numbers<[1], [0], [0], [1], [0, 0, 1, 1], [], []>} : vector<16x512xbf16>, vector<512x256xbf16>, vector<16x256xf32> -> vector<16x256xf32>
    %7 = arith.addf %3, %6 : vector<16x256xf32>
    %c0_6 = arith.constant 0 : index
    %c0_7 = arith.constant 0 : index
    %8 = vector.load %arg6[%c0_6, %c0_7] : memref<16x256xf32, #tpu.memory_space<vmem>>, vector<16x256xf32>
    tpu.vector_store %arg6[%c0_6, %c0_7], %7 {strides = array<i32>} : memref<16x256xf32, #tpu.memory_space<vmem>>, vector<16x256xf32>,
    %c0_i32_8 = arith.constant 0 : i32
    %9 = arith.cmpi eq, %arg2, %c0_i32_8 : i32
    %10 = arith.extui %9 : i1 to i32
    %c0_i32_9 = arith.constant 0 : i32
    %11 = arith.cmpi ne, %10, %c0_i32_9 : i32
    scf.if %11 {
      %c0_10 = arith.constant 0 : index
      %c0_11 = arith.constant 0 : index
      %12 = vector.load %arg6[%c0_10, %c0_11] : memref<16x256xf32, #tpu.memory_space<vmem>>, vector<16x256xf32>
      %13 = arith.truncf %12 : vector<16x256xf32> to vector<16x256xbf16>
      %c0_12 = arith.constant 0 : index
      %c0_13 = arith.constant 0 : index
      %14 = vector.load %arg5[%c0_12, %c0_13] : memref<16x256xbf16, #tpu.memory_space<vmem>>, vector<16x256xbf16>
      tpu.vector_store %arg5[%c0_12, %c0_13], %13 {strides = array<i32>} : memref<16x256xbf16, #tpu.memory_space<vmem>>, vector<16x256xbf16>,
    } else {
    }
    return
  }
  func.func @transform_0(%arg0: i32, %arg1: i32, %arg2: i32) -> (i32, i32) {
    %c0_i32 = arith.constant 0 : i32
    return %arg0, %arg2 : i32, i32
  }
  func.func @transform_1(%arg0: i32, %arg1: i32, %arg2: i32) -> (i32, i32) {
    %c0_i32 = arith.constant 0 : i32
    return %arg2, %arg1 : i32, i32
  }
  func.func @transform_2(%arg0: i32, %arg1: i32, %arg2: i32) -> (i32, i32) {
    %c0_i32 = arith.constant 0 : i32
    return %arg0, %arg1 : i32, i32
  }
}

module attributes {stable_mosaic.version = 11 : i64} {
  func.func @_matmul_kernel(%arg0: i32, %arg1: i32, %arg2: i32, %arg3: memref<16x512xbf16, #tpu.memory_space<vmem>>, %arg4: memref<512x256xbf16, #tpu.memory_space<vmem>>, %arg5: memref<16x256xbf16, #tpu.memory_space<vmem>>, %arg6: memref<16x256xf32, #tpu.memory_space<vmem>>) attributes {dimension_semantics = [#tpu.dimension_semantics<parallel>, #tpu.dimension_semantics<parallel>, #tpu.dimension_semantics<arbitrary>], iteration_bounds = array<i64: 1, 2, 1>, scalar_prefetch = 0 : i64, scratch_operands = 1 : i64, tpu.core_type = #tpu.core_type<tc>, window_params = [{transform_indices = @transform_0, window_bounds = array<i64: 16, 512>}, {transform_indices = @transform_1, window_bounds = array<i64: 512, 256>}, {transform_indices = @transform_2, window_bounds = array<i64: 16, 256>}]} {
    %c0_i32 = arith.constant 0 : i32
    %0 = arith.cmpi eq, %arg2, %c0_i32 : i32
    %1 = arith.extui %0 : i1 to i32
    %c0_i32_0 = arith.constant 0 : i32
    %2 = arith.cmpi ne, %1, %c0_i32_0 : i32
    scf.if %2 {
      %cst_10 = arith.constant 0.000000e+00 : f32
      %12 = vector.broadcast %cst_10 : f32 to vector<16x256xf32>
      %c0_11 = arith.constant 0 : index
      %c0_12 = arith.constant 0 : index
      %13 = vector.load %arg6[%c0_11, %c0_12] : memref<16x256xf32, #tpu.memory_space<vmem>>, vector<16x256xf32>
      tpu.vector_store %arg6[%c0_11, %c0_12], %12 {strides = array<i32>} : memref<16x256xf32, #tpu.memory_space<vmem>>, vector<16x256xf32>,
    } else {
    }
    %c0 = arith.constant 0 : index
    %c0_1 = arith.constant 0 : index
    %3 = vector.load %arg6[%c0, %c0_1] : memref<16x256xf32, #tpu.memory_space<vmem>>, vector<16x256xf32>
    %c0_2 = arith.constant 0 : index
    %c0_3 = arith.constant 0 : index
    %4 = vector.load %arg3[%c0_2, %c0_3] : memref<16x512xbf16, #tpu.memory_space<vmem>>, vector<16x512xbf16>
    %c0_4 = arith.constant 0 : index
    %c0_5 = arith.constant 0 : index
    %5 = vector.load %arg4[%c0_4, %c0_5] : memref<512x256xbf16, #tpu.memory_space<vmem>>, vector<512x256xbf16>
    %cst = arith.constant dense<0.000000e+00> : vector<16x256xf32>
    %6 = tpu.matmul %4, %5, %cst {dimension_numbers = #tpu.dot_dimension_numbers<[1], [0], [0], [1], [0, 0, 1, 1], [], []>} : vector<16x512xbf16>, vector<512x256xbf16>, vector<16x256xf32> -> vector<16x256xf32>
    %7 = arith.addf %3, %6 : vector<16x256xf32>
    %c0_6 = arith.constant 0 : index
    %c0_7 = arith.constant 0 : index
    %8 = vector.load %arg6[%c0_6, %c0_7] : memref<16x256xf32, #tpu.memory_space<vmem>>, vector<16x256xf32>
    tpu.vector_store %arg6[%c0_6, %c0_7], %7 {strides = array<i32>} : memref<16x256xf32, #tpu.memory_space<vmem>>, vector<16x256xf32>,
    %c0_i32_8 = arith.constant 0 : i32
    %9 = arith.cmpi eq, %arg2, %c0_i32_8 : i32
    %10 = arith.extui %9 : i1 to i32
    %c0_i32_9 = arith.constant 0 : i32
    %11 = arith.cmpi ne, %10, %c0_i32_9 : i32
    scf.if %11 {
      %c0_10 = arith.constant 0 : index
      %c0_11 = arith.constant 0 : index
      %12 = vector.load %arg6[%c0_10, %c0_11] : memref<16x256xf32, #tpu.memory_space<vmem>>, vector<16x256xf32>
      %13 = arith.truncf %12 : vector<16x256xf32> to vector<16x256xbf16>
      %c0_12 = arith.constant 0 : index
      %c0_13 = arith.constant 0 : index
      %14 = vector.load %arg5[%c0_12, %c0_13] : memref<16x256xbf16, #tpu.memory_space<vmem>>, vector<16x256xbf16>
      tpu.vector_store %arg5[%c0_12, %c0_13], %13 {strides = array<i32>} : memref<16x256xbf16, #tpu.memory_space<vmem>>, vector<16x256xbf16>,
    } else {
    }
    return
  }
  func.func @transform_0(%arg0: i32, %arg1: i32, %arg2: i32) -> (i32, i32) {
    %c0_i32 = arith.constant 0 : i32
    return %arg0, %arg2 : i32, i32
  }
  func.func @transform_1(%arg0: i32, %arg1: i32, %arg2: i32) -> (i32, i32) {
    %c0_i32 = arith.constant 0 : i32
    return %arg2, %arg1 : i32, i32
  }
  func.func @transform_2(%arg0: i32, %arg1: i32, %arg2: i32) -> (i32, i32) {
    %c0_i32 = arith.constant 0 : i32
    return %arg0, %arg1 : i32, i32
  }
}

module attributes {stable_mosaic.version = 11 : i64} {
  func.func @_gqa_attention_kernel(%arg0: i32, %arg1: i32, %arg2: i32, %arg3: i32, %arg4: memref<1x1x16x128xbf16, #tpu.memory_space<vmem>>, %arg5: memref<1x8x256xbf16, #tpu.memory_space<vmem>>, %arg6: memref<1x1x8xf32, #tpu.memory_space<vmem>>, %arg7: memref<1x1x16x128xbf16, #tpu.memory_space<vmem>>, %arg8: memref<16x1xf32, #tpu.memory_space<vmem>>, %arg9: memref<16x1xf32, #tpu.memory_space<vmem>>, %arg10: memref<16x128xf32, #tpu.memory_space<vmem>>) attributes {dimension_semantics = [#tpu.dimension_semantics<parallel>, #tpu.dimension_semantics<parallel>, #tpu.dimension_semantics<parallel>, #tpu.dimension_semantics<arbitrary>], iteration_bounds = array<i64: 2, 2, 1, 1>, scalar_prefetch = 0 : i64, scratch_operands = 3 : i64, tpu.core_type = #tpu.core_type<tc>, window_params = [{transform_indices = @transform_0, window_bounds = array<i64: 1, 1, 16, 128>}, {transform_indices = @transform_1, window_bounds = array<i64: 1, 8, 256>}, {transform_indices = @transform_2, window_bounds = array<i64: 1, 1, 8>}, {transform_indices = @transform_3, window_bounds = array<i64: 1, 1, 16, 128>}]} {
    %c0_i32 = arith.constant 0 : i32
    %0 = arith.cmpi eq, %arg3, %c0_i32 : i32
    %1 = arith.extui %0 : i1 to i32
    %c0_i32_0 = arith.constant 0 : i32
    %2 = arith.cmpi ne, %1, %c0_i32_0 : i32
    scf.if %2 {
      %cst_29 = arith.constant 0xFF800000 : f32
      %40 = vector.broadcast %cst_29 : f32 to vector<16x1xf32>
      %c0_30 = arith.constant 0 : index
      %c0_31 = arith.constant 0 : index
      %41 = vector.load %arg8[%c0_30, %c0_31] : memref<16x1xf32, #tpu.memory_space<vmem>>, vector<16x1xf32>
      tpu.vector_store %arg8[%c0_30, %c0_31], %40 {strides = array<i32>} : memref<16x1xf32, #tpu.memory_space<vmem>>, vector<16x1xf32>,
      %cst_32 = arith.constant 0.000000e+00 : f32
      %42 = vector.broadcast %cst_32 : f32 to vector<16x1xf32>
      %c0_33 = arith.constant 0 : index
      %c0_34 = arith.constant 0 : index
      %43 = vector.load %arg9[%c0_33, %c0_34] : memref<16x1xf32, #tpu.memory_space<vmem>>, vector<16x1xf32>
      tpu.vector_store %arg9[%c0_33, %c0_34], %42 {strides = array<i32>} : memref<16x1xf32, #tpu.memory_space<vmem>>, vector<16x1xf32>,
      %cst_35 = arith.constant 0.000000e+00 : f32
      %44 = vector.broadcast %cst_35 : f32 to vector<16x128xf32>
      %c0_36 = arith.constant 0 : index
      %c0_37 = arith.constant 0 : index
      %45 = vector.load %arg10[%c0_36, %c0_37] : memref<16x128xf32, #tpu.memory_space<vmem>>, vector<16x128xf32>
      tpu.vector_store %arg10[%c0_36, %c0_37], %44 {strides = array<i32>} : memref<16x128xf32, #tpu.memory_space<vmem>>, vector<16x128xf32>,
    } else {
    }
    %c0 = arith.constant 0 : index
    %c0_1 = arith.constant 0 : index
    %c0_2 = arith.constant 0 : index
    %c0_3 = arith.constant 0 : index
    %3 = vector.load %arg4[%c0, %c0_1, %c0_2, %c0_3] : memref<1x1x16x128xbf16, #tpu.memory_space<vmem>>, vector<1x1x16x128xbf16>
    %4 = vector.shape_cast %3 : vector<1x1x16x128xbf16> to vector<16x128xbf16>
    %c0_4 = arith.constant 0 : index
    %c0_5 = arith.constant 0 : index
    %c0_6 = arith.constant 0 : index
    %5 = vector.load %arg5[%c0_4, %c0_5, %c0_6] : memref<1x8x256xbf16, #tpu.memory_space<vmem>>, vector<1x8x128xbf16>
    %6 = vector.shape_cast %5 : vector<1x8x128xbf16> to vector<8x128xbf16>
    %c0_7 = arith.constant 0 : index
    %c0_8 = arith.constant 0 : index
    %c128 = arith.constant 128 : index
    %7 = vector.load %arg5[%c0_7, %c0_8, %c128] : memref<1x8x256xbf16, #tpu.memory_space<vmem>>, vector<1x8x128xbf16>
    %8 = vector.shape_cast %7 : vector<1x8x128xbf16> to vector<8x128xbf16>
    %cst = arith.constant dense<0.000000e+00> : vector<16x8xf32>
    %9 = tpu.matmul %4, %6, %cst {dimension_numbers = #tpu.dot_dimension_numbers<[1], [1], [0], [0], [0, 0, 1, 0], [], []>} : vector<16x128xbf16>, vector<8x128xbf16>, vector<16x8xf32> -> vector<16x8xf32>
    %c0_9 = arith.constant 0 : index
    %c0_10 = arith.constant 0 : index
    %c0_11 = arith.constant 0 : index
    %10 = vector.load %arg6[%c0_9, %c0_10, %c0_11] : memref<1x1x8xf32, #tpu.memory_space<vmem>>, vector<1x1x8xf32>
    %11 = vector.shape_cast %10 : vector<1x1x8xf32> to vector<1x8xf32>
    %12 = vector.broadcast %11 : vector<1x8xf32> to vector<16x8xf32>
    %13 = arith.addf %9, %12 : vector<16x8xf32>
    %c0_12 = arith.constant 0 : index
    %c0_13 = arith.constant 0 : index
    %14 = vector.load %arg8[%c0_12, %c0_13] : memref<16x1xf32, #tpu.memory_space<vmem>>, vector<16x1xf32>
    %cst_14 = arith.constant dense<0xFF800000> : vector<16xf32>
    %15 = vector.multi_reduction <maximumf>, %13, %cst_14 [1] : vector<16x8xf32> to vector<16xf32>
    %16 = vector.shape_cast %15 : vector<16xf32> to vector<16x1xf32>
    %17 = arith.maximumf %14, %16 : vector<16x1xf32>
    %18 = arith.subf %14, %17 : vector<16x1xf32>
    %19 = math.exp %18 : vector<16x1xf32>
    %20 = vector.broadcast %17 : vector<16x1xf32> to vector<16x8xf32>
    %21 = arith.subf %13, %20 : vector<16x8xf32>
    %22 = math.exp %21 : vector<16x8xf32>
    %c0_15 = arith.constant 0 : index
    %c0_16 = arith.constant 0 : index
    %23 = vector.load %arg9[%c0_15, %c0_16] : memref<16x1xf32, #tpu.memory_space<vmem>>, vector<16x1xf32>
    %24 = arith.mulf %19, %23 : vector<16x1xf32>
    %cst_17 = arith.constant dense<0.000000e+00> : vector<16xf32>
    %25 = vector.multi_reduction <add>, %22, %cst_17 [1] : vector<16x8xf32> to vector<16xf32>
    %26 = vector.shape_cast %25 : vector<16xf32> to vector<16x1xf32>
    %27 = arith.addf %24, %26 : vector<16x1xf32>
    %c0_18 = arith.constant 0 : index
    %c0_19 = arith.constant 0 : index
    %28 = vector.load %arg9[%c0_18, %c0_19] : memref<16x1xf32, #tpu.memory_space<vmem>>, vector<16x1xf32>
    tpu.vector_store %arg9[%c0_18, %c0_19], %27 {strides = array<i32>} : memref<16x1xf32, #tpu.memory_space<vmem>>, vector<16x1xf32>,
    %c0_20 = arith.constant 0 : index
    %c0_21 = arith.constant 0 : index
    %29 = vector.load %arg10[%c0_20, %c0_21] : memref<16x128xf32, #tpu.memory_space<vmem>>, vector<16x128xf32>
    %30 = vector.broadcast %19 : vector<16x1xf32> to vector<16x128xf32>
    %31 = arith.mulf %30, %29 : vector<16x128xf32>
    %32 = arith.truncf %22 : vector<16x8xf32> to vector<16x8xbf16>
    %cst_22 = arith.constant dense<0.000000e+00> : vector<16x128xf32>
    %33 = tpu.matmul %32, %8, %cst_22 {dimension_numbers = #tpu.dot_dimension_numbers<[1], [0], [0], [1], [0, 0, 1, 1], [], []>} : vector<16x8xbf16>, vector<8x128xbf16>, vector<16x128xf32> -> vector<16x128xf32>
    %34 = arith.addf %31, %33 : vector<16x128xf32>
    %c0_23 = arith.constant 0 : index
    %c0_24 = arith.constant 0 : index
    %35 = vector.load %arg10[%c0_23, %c0_24] : memref<16x128xf32, #tpu.memory_space<vmem>>, vector<16x128xf32>
    tpu.vector_store %arg10[%c0_23, %c0_24], %34 {strides = array<i32>} : memref<16x128xf32, #tpu.memory_space<vmem>>, vector<16x128xf32>,
    %c0_25 = arith.constant 0 : index
    %c0_26 = arith.constant 0 : index
    %36 = vector.load %arg8[%c0_25, %c0_26] : memref<16x1xf32, #tpu.memory_space<vmem>>, vector<16x1xf32>
    tpu.vector_store %arg8[%c0_25, %c0_26], %17 {strides = array<i32>} : memref<16x1xf32, #tpu.memory_space<vmem>>, vector<16x1xf32>,
    %c0_i32_27 = arith.constant 0 : i32
    %37 = arith.cmpi eq, %arg3, %c0_i32_27 : i32
    %38 = arith.extui %37 : i1 to i32
    %c0_i32_28 = arith.constant 0 : i32
    %39 = arith.cmpi ne, %38, %c0_i32_28 : i32
    scf.if %39 {
      %c0_29 = arith.constant 0 : index
      %c0_30 = arith.constant 0 : index
      %40 = vector.load %arg10[%c0_29, %c0_30] : memref<16x128xf32, #tpu.memory_space<vmem>>, vector<16x128xf32>
      %c0_31 = arith.constant 0 : index
      %c0_32 = arith.constant 0 : index
      %41 = vector.load %arg9[%c0_31, %c0_32] : memref<16x1xf32, #tpu.memory_space<vmem>>, vector<16x1xf32>
      %42 = vector.broadcast %41 : vector<16x1xf32> to vector<16x128xf32>
      %43 = arith.divf %40, %42 : vector<16x128xf32>
      %44 = arith.truncf %43 : vector<16x128xf32> to vector<16x128xbf16>
      %c0_33 = arith.constant 0 : index
      %c0_34 = arith.constant 0 : index
      %c0_35 = arith.constant 0 : index
      %c0_36 = arith.constant 0 : index
      %45 = vector.load %arg7[%c0_33, %c0_34, %c0_35, %c0_36] : memref<1x1x16x128xbf16, #tpu.memory_space<vmem>>, vector<1x1x16x128xbf16>
      %46 = vector.shape_cast %45 : vector<1x1x16x128xbf16> to vector<16x128xbf16>
      %47 = vector.shape_cast %44 : vector<16x128xbf16> to vector<1x1x16x128xbf16>
      tpu.vector_store %arg7[%c0_33, %c0_34, %c0_35, %c0_36], %47 {strides = array<i32>} : memref<1x1x16x128xbf16, #tpu.memory_space<vmem>>, vector<1x1x16x128xbf16>,
    } else {
    }
    return
  }
  func.func @transform_0(%arg0: i32, %arg1: i32, %arg2: i32, %arg3: i32) -> (i32, i32, i32, i32) {
    %c0_i32 = arith.constant 0 : i32
    %c0_i32_0 = arith.constant 0 : i32
    return %arg0, %arg1, %arg2, %c0_i32 : i32, i32, i32, i32
  }
  func.func @transform_1(%arg0: i32, %arg1: i32, %arg2: i32, %arg3: i32) -> (i32, i32, i32) {
    %c0_i32 = arith.constant 0 : i32
    return %arg0, %arg3, %arg1 : i32, i32, i32
  }
  func.func @transform_2(%arg0: i32, %arg1: i32, %arg2: i32, %arg3: i32) -> (i32, i32, i32) {
    %c0_i32 = arith.constant 0 : i32
    %c0_i32_0 = arith.constant 0 : i32
    return %arg0, %c0_i32, %arg3 : i32, i32, i32
  }
  func.func @transform_3(%arg0: i32, %arg1: i32, %arg2: i32, %arg3: i32) -> (i32, i32, i32, i32) {
    %c0_i32 = arith.constant 0 : i32
    %c0_i32_0 = arith.constant 0 : i32
    return %arg0, %arg1, %arg2, %c0_i32 : i32, i32, i32, i32
  }
}

</mosaic_0001>

<llo_original>
// kernel: gqa_forward.5
$region0: #{gqa_forward.5}
  #allocation0 [shape = 'u32[]', space=smem, size = 0x4, offset = 0x4, fixed_abs, tag = 'smem constant byte address 0x4 - core index']
  #allocation1 [shape = 'u32[72,128]{1,0:T(1,128)}', space=vmem, size = 0x9000, scoped, tag = 'internal scratch']
  #allocation2 [shape = 'f32[16,256]{1,0:T(8,128)}', space=vmem, size = 0x4000, scoped, tag = 'scratch operand']
  %s0 = inlined_call_operand.vmem [shape: bf16[16,512], index: 0, kind: input, shape index: {}]
  %s1 = inlined_call_operand.vmem [shape: bf16[512,512], index: 1, kind: input, shape index: {}]
  %s2 = inlined_call_operand.vmem [shape: bf16[16,512], index: 2, kind: output, shape index: {}]
  %s3 = sld [smem:[#allocation0]]
  $region121: #{gqa_forward.5} parent=0
    _
  %s5 = ssub.s32 1, %s3
  %s6 = scalar_select 0, %s5, %s3
  $region1: #{gqa_forward.5} parent=0
    #allocation3 [shape = 'u8[524288]{0}', space=vmem, size = 0x80000, scoped, tag = 'input window, operand 1']
    #allocation4 [shape = 'u8[16384]{0}', space=vmem, size = 0x4000, scoped, tag = 'output window, operand 0']
    loop: start=0, step=1, limit=4
    $region2: #{gqa_forward.5} parent=1 // loop_pre_header
      _
    $region3: #{gqa_forward.5} parent=1 // loop_header
      %s8 = sphi 0, %s12
      %p9 = scmp.ge.s32.totalorder %s8, 4
      %s15 = sphi 0, %s34
      %s16 = sphi 0, %s30
      %s17 = sphi 0, %s26
      %s18 = sphi 0, %s15
      %s19 = sphi 0, %s16
      %s20 = sphi 0, %s17
      %s21 = sphi 0, %s18
      %s22 = sphi 0, %s19
      %s23 = sphi 0, %s20
      %s39 = sphi 0, %s41
      %s42 = sphi 0, %s39
      %s43 = sphi 0, %s42
      %s59 = sphi 0, %s43
      %s67 = sphi 0, %s69
      %s70 = sphi 0, %s67
      %s71 = sphi 0, %s70
      %s87 = sphi 0, %s71
      %s95 = sphi 0, %s97
      %s98 = sphi 0, %s95
      %s99 = sphi 0, %s98
      %s115 = sphi 0, %s99
    $region4: #{gqa_forward.5} parent=1 // loop_header_branch
      %11 = sbr.rel (%p9) target = $region8
    $region5: #{gqa_forward.5} parent=1 // loop_body
      %s13 = ssub.s32 %s8, 1
      %s14 = ssub.s32 %s8, 2
      %s24 = sadd.s32 1, %s17
      %p25 = scmp.ge.s32.totalorder %s24, 1
      %s26 = scalar_select %p25, 0, %s24
      %s27 = sadd.s32 1, %s16
      %s28 = scalar_select %p25, %s27, %s16
      %p29 = scmp.ge.s32.totalorder %s28, 2
      %s30 = scalar_select %p29, 0, %s28
      %s31 = sadd.s32 1, %s15
      %s32 = scalar_select %p29, %s31, %s15
      %p33 = scmp.ge.s32.totalorder %s32, 1
      %s34 = scalar_select %p33, 0, %s32
      %s35 = ssub.s32 %s15, %s34
      %s36 = ssub.s32 %s17, %s26
      %s37 = sor.u32 %s35, %s36
      %p38 = scmp.eq.s32.totalorder %s37, 0
      %s40 = sadd.s32 %s39, 1
      %s41 = scalar_select %p38, %s39, %s40
      %p44 = pneg %p38
      %p45 = scmp.eq.s32.totalorder %s8, 1
      %p46 = por %p44, %p45
      %p47 = scmp.ne.s32.totalorder %s39, %s42
      %p48 = scmp.eq.s32.totalorder %s8, 0
      %p49 = por %p47, %p48
      %p50 = scmp.ne.s32.totalorder %s39, %s42
      %p51 = scmp.eq.s32.totalorder %s13, 1
      %p52 = por %p50, %p51
      %p53 = scmp.ne.s32.totalorder %s42, %s43
      %p54 = scmp.eq.s32.totalorder %s13, 0
      %p55 = por %p53, %p54
      %p56 = scmp.ne.s32.totalorder %s42, %s43
      %p57 = scmp.eq.s32.totalorder %s14, 1
      %p58 = por %p56, %p57
      %p60 = scmp.ne.s32.totalorder %s43, %s59
      %p61 = scmp.eq.s32.totalorder %s14, 0
      %p62 = por %p60, %p61
      %s63 = ssub.s32 %s17, %s26
      %s64 = ssub.s32 %s16, %s30
      %s65 = sor.u32 %s63, %s64
      %p66 = scmp.eq.s32.totalorder %s65, 0
      %s68 = sadd.s32 %s67, 1
      %s69 = scalar_select %p66, %s67, %s68
      %p72 = pneg %p66
      %p73 = scmp.eq.s32.totalorder %s8, 1
      %p74 = por %p72, %p73
      %p75 = scmp.ne.s32.totalorder %s67, %s70
      %p76 = scmp.eq.s32.totalorder %s8, 0
      %p77 = por %p75, %p76
      %p78 = scmp.ne.s32.totalorder %s67, %s70
      %p79 = scmp.eq.s32.totalorder %s13, 1
      %p80 = por %p78, %p79
      %p81 = scmp.ne.s32.totalorder %s70, %s71
      %p82 = scmp.eq.s32.totalorder %s13, 0
      %p83 = por %p81, %p82
      %p84 = scmp.ne.s32.totalorder %s70, %s71
      %p85 = scmp.eq.s32.totalorder %s14, 1
      %p86 = por %p84, %p85
      %p88 = scmp.ne.s32.totalorder %s71, %s87
      %p89 = scmp.eq.s32.totalorder %s14, 0
      %p90 = por %p88, %p89
      %s91 = ssub.s32 %s15, %s34
      %s92 = ssub.s32 %s16, %s30
      %s93 = sor.u32 %s91, %s92
      %p94 = scmp.eq.s32.totalorder %s93, 0
      %s96 = sadd.s32 %s95, 1
      %s97 = scalar_select %p94, %s95, %s96
      %p100 = pneg %p94
      %p101 = scmp.eq.s32.totalorder %s8, 1
      %p102 = por %p100, %p101
      %p103 = scmp.ne.s32.totalorder %s95, %s98
      %p104 = scmp.eq.s32.totalorder %s8, 0
      %p105 = por %p103, %p104
      %p106 = scmp.ne.s32.totalorder %s95, %s98
      %p107 = scmp.eq.s32.totalorder %s13, 1
      %p108 = por %p106, %p107
      %p109 = scmp.ne.s32.totalorder %s98, %s99
      %p110 = scmp.eq.s32.totalorder %s13, 0
      %p111 = por %p109, %p110
      %p112 = scmp.ne.s32.totalorder %s98, %s99
      %p113 = scmp.eq.s32.totalorder %s14, 1
      %p114 = por %p112, %p113
      %p116 = scmp.ne.s32.totalorder %s99, %s115
      %p117 = scmp.eq.s32.totalorder %s14, 0
      %p118 = por %p116, %p117
      %p119 = scmp.le.s32.totalorder 1, %s8
      %p120 = scmp.lt.s32.totalorder %s8, 3
      %p121 = pnand %p119, %p120
      %p122 = pneg %p121
      // Predicated region
      $region9: #{gqa_forward.5} parent=5 // pred_check
        _
      $region10: #{gqa_forward.5} parent=5 // pred_check_branch
        %124 = sbr.rel (%p121) target = $region12
      $region11: #{gqa_forward.5} parent=5 // pred_region
        %s125 = ssub.s32 %s8, 1
        // Predicated region
        $region13: #{gqa_forward.5} parent=11 // pred_check
          %p126 = pneg %p55
        $region14: #{gqa_forward.5} parent=11 // pred_check_branch
          %128 = sbr.rel (%p126) target = $region16
        $region15: #{gqa_forward.5} parent=11 // pred_region
          %s129 = smul.u32 2, %s18
          %s130 = smul.u32 4, %s20
          %p131 = scmp.lt.s32.totalorder %s129, 1
          %s132 = scalar_select %p131, %s129, 1
          %p133 = scmp.lt.s32.totalorder %s130, 3
          %s134 = scalar_select %p133, %s130, 3
          %s135 = smul.addr %s132, 4
          %s136 = sadd.s32 %s134, %s135
          %s137 = smul.addr %s136, 4
          %s138 = scalar_lea.vmem %s0, %s137
          %s139 = smul.u32 2, %s18
          %s140 = smul.u32 4, %s20
        $region16: #{gqa_forward.5} parent=11 // pred_fallthru
          _
      $region12: #{gqa_forward.5} parent=5 // pred_fallthru
        _
      %p141 = scmp.lt.s32.totalorder %s8, 2
      // Predicated region
      $region17: #{gqa_forward.5} parent=5 // pred_check
        %p142 = pneg %p141
      $region18: #{gqa_forward.5} parent=5 // pred_check_branch
        %144 = sbr.rel (%p142) target = $region20
      $region19: #{gqa_forward.5} parent=5 // pred_region
        // Predicated region
        $region21: #{gqa_forward.5} parent=19 // pred_check
          %p145 = pneg %p77
        $region22: #{gqa_forward.5} parent=19 // pred_check_branch
          %147 = sbr.rel (%p145) target = $region24
        $region23: #{gqa_forward.5} parent=19 // pred_region
          %s148 = sand.u32 %s67, 1
          %s149 = sand.u32 %s67, 1
          %s150 = smul.addr %s149, 512
          %s151 = scalar_lea.vmem [#allocation3], %s150
          %s152 = smul.u32 64, %s17
          %s153 = smul.u32 2, %s16
          %s154 = smul.addr %s152, 4
          %s155 = sadd.s32 %s153, %s154
          %s156 = smul.addr %s155, 4
          %s157 = scalar_lea.vmem %s1, %s156
          // Predicated region
          $region25: #{gqa_forward.5} parent=23 // pred_check
            _
          $region26: #{gqa_forward.5} parent=23 // pred_check_branch
            %159 = sbr.rel (0) target = $region28
          $region27: #{gqa_forward.5} parent=23 // pred_region
            // Predicated region
            $region29: #{gqa_forward.5} parent=27 // pred_check
              _
            $region30: #{gqa_forward.5} parent=27 // pred_check_branch
              %161 = sbr.rel (0) target = $region32
            $region31: #{gqa_forward.5} parent=27 // pred_region
              // Predicated region
              $region44: #{gqa_forward.5} parent=31 // pred_check
                _
              $region45: #{gqa_forward.5} parent=31 // pred_check_branch
                %303 = sbr.rel (0) target = $region47
              $region46: #{gqa_forward.5} parent=31 // pred_region
                loop: start=0, step=1, limit=1
                $region48: #{gqa_forward.5} parent=46 // loop_pre_header
                  _
                $region49: #{gqa_forward.5} parent=46 // loop_header
                  %s305 = sphi 0, %s309
                  %p306 = scmp.ge.s32.totalorder %s305, 1
                  %s310 = sphi %s157, %s157
                  %s311 = sphi %s151, %s151
                $region50: #{gqa_forward.5} parent=46 // loop_header_branch
                  %308 = sbr.rel (%p306) target = $region54
                $region51: #{gqa_forward.5} parent=46 // loop_body
                  %v312 = vld [vmem:[%s310] sm:$0xff]
                  %313 = vst [vmem:[%s311] sm:$0xff] %v312
                  %v314 = vld [vmem:[%s310 + $0x10] sm:$0xff]
                  %315 = vst [vmem:[%s311 + $0x8] sm:$0xff] %v314
                  %v316 = vld [vmem:[%s310 + $0x20] sm:$0xff]
                  %317 = vst [vmem:[%s311 + $0x10] sm:$0xff] %v316
                  %v318 = vld [vmem:[%s310 + $0x30] sm:$0xff]
                  %319 = vst [vmem:[%s311 + $0x18] sm:$0xff] %v318
                  %v320 = vld [vmem:[%s310 + $0x40] sm:$0xff]
                  %321 = vst [vmem:[%s311 + $0x20] sm:$0xff] %v320
                  %v322 = vld [vmem:[%s310 + $0x50] sm:$0xff]
                  %323 = vst [vmem:[%s311 + $0x28] sm:$0xff] %v322
                  %v324 = vld [vmem:[%s310 + $0x60] sm:$0xff]
                  %325 = vst [vmem:[%s311 + $0x30] sm:$0xff] %v324
                  %v326 = vld [vmem:[%s310 + $0x70] sm:$0xff]
                  %327 = vst [vmem:[%s311 + $0x38] sm:$0xff] %v326
                  %v328 = vld [vmem:[%s310 + $0x80] sm:$0xff]
                  %329 = vst [vmem:[%s311 + $0x40] sm:$0xff] %v328
                  %v330 = vld [vmem:[%s310 + $0x90] sm:$0xff]
                  %331 = vst [vmem:[%s311 + $0x48] sm:$0xff] %v330
                  %v332 = vld [vmem:[%s310 + $0xa0] sm:$0xff]
                  %333 = vst [vmem:[%s311 + $0x50] sm:$0xff] %v332
                  %v334 = vld [vmem:[%s310 + $0xb0] sm:$0xff]
                  %335 = vst [vmem:[%s311 + $0x58] sm:$0xff] %v334
                  %v336 = vld [vmem:[%s310 + $0xc0] sm:$0xff]
                  %337 = vst [vmem:[%s311 + $0x60] sm:$0xff] %v336
                  %v338 = vld [vmem:[%s310 + $0xd0] sm:$0xff]
                  %339 = vst [vmem:[%s311 + $0x68] sm:$0xff] %v338
                  %v340 = vld [vmem:[%s310 + $0xe0] sm:$0xff]
                  %341 = vst [vmem:[%s311 + $0x70] sm:$0xff] %v340
                  %v342 = vld [vmem:[%s310 + $0xf0] sm:$0xff]
                  %343 = vst [vmem:[%s311 + $0x78] sm:$0xff] %v342
                  %v344 = vld [vmem:[%s310 + $0x100] sm:$0xff]
                  %345 = vst [vmem:[%s311 + $0x80] sm:$0xff] %v344
                  %v346 = vld [vmem:[%s310 + $0x110] sm:$0xff]
                  %347 = vst [vmem:[%s311 + $0x88] sm:$0xff] %v346
                  %v348 = vld [vmem:[%s310 + $0x120] sm:$0xff]
                  %349 = vst [vmem:[%s311 + $0x90] sm:$0xff] %v348
                  %v350 = vld [vmem:[%s310 + $0x130] sm:$0xff]
                  %351 = vst [vmem:[%s311 + $0x98] sm:$0xff] %v350
                  %v352 = vld [vmem:[%s310 + $0x140] sm:$0xff]
                  %353 = vst [vmem:[%s311 + $0xa0] sm:$0xff] %v352
                  %v354 = vld [vmem:[%s310 + $0x150] sm:$0xff]
                  %355 = vst [vmem:[%s311 + $0xa8] sm:$0xff] %v354
                  %v356 = vld [vmem:[%s310 + $0x160] sm:$0xff]
                  %357 = vst [vmem:[%s311 + $0xb0] sm:$0xff] %v356
                  %v358 = vld [vmem:[%s310 + $0x170] sm:$0xff]
                  %359 = vst [vmem:[%s311 + $0xb8] sm:$0xff] %v358
                  %v360 = vld [vmem:[%s310 + $0x180] sm:$0xff]
                  %361 = vst [vmem:[%s311 + $0xc0] sm:$0xff] %v360
                  %v362 = vld [vmem:[%s310 + $0x190] sm:$0xff]
                  %363 = vst [vmem:[%s311 + $0xc8] sm:$0xff] %v362
                  %v364 = vld [vmem:[%s310 + $0x1a0] sm:$0xff]
                  %365 = vst [vmem:[%s311 + $0xd0] sm:$0xff] %v364
                  %v366 = vld [vmem:[%s310 + $0x1b0] sm:$0xff]
                  %367 = vst [vmem:[%s311 + $0xd8] sm:$0xff] %v366
                  %v368 = vld [vmem:[%s310 + $0x1c0] sm:$0xff]
                  %369 = vst [vmem:[%s311 + $0xe0] sm:$0xff] %v368
                  %v370 = vld [vmem:[%s310 + $0x1d0] sm:$0xff]
                  %371 = vst [vmem:[%s311 + $0xe8] sm:$0xff] %v370
                  %v372 = vld [vmem:[%s310 + $0x1e0] sm:$0xff]
                  %373 = vst [vmem:[%s311 + $0xf0] sm:$0xff] %v372
                  %v374 = vld [vmem:[%s310 + $0x1f0] sm:$0xff]
                  %375 = vst [vmem:[%s311 + $0xf8] sm:$0xff] %v374
                  %v376 = vld [vmem:[%s310 + $0x200] sm:$0xff]
                  %377 = vst [vmem:[%s311 + $0x100] sm:$0xff] %v376
                  %v378 = vld [vmem:[%s310 + $0x210] sm:$0xff]
                  %379 = vst [vmem:[%s311 + $0x108] sm:$0xff] %v378
                  %v380 = vld [vmem:[%s310 + $0x220] sm:$0xff]
                  %381 = vst [vmem:[%s311 + $0x110] sm:$0xff] %v380
                  %v382 = vld [vmem:[%s310 + $0x230] sm:$0xff]
                  %383 = vst [vmem:[%s311 + $0x118] sm:$0xff] %v382
                  %v384 = vld [vmem:[%s310 + $0x240] sm:$0xff]
                  %385 = vst [vmem:[%s311 + $0x120] sm:$0xff] %v384
                  %v386 = vld [vmem:[%s310 + $0x250] sm:$0xff]
                  %387 = vst [vmem:[%s311 + $0x128] sm:$0xff] %v386
                  %v388 = vld [vmem:[%s310 + $0x260] sm:$0xff]
                  %389 = vst [vmem:[%s311 + $0x130] sm:$0xff] %v388
                  %v390 = vld [vmem:[%s310 + $0x270] sm:$0xff]
                  %391 = vst [vmem:[%s311 + $0x138] sm:$0xff] %v390
                  %v392 = vld [vmem:[%s310 + $0x280] sm:$0xff]
                  %393 = vst [vmem:[%s311 + $0x140] sm:$0xff] %v392
                  %v394 = vld [vmem:[%s310 + $0x290] sm:$0xff]
                  %395 = vst [vmem:[%s311 + $0x148] sm:$0xff] %v394
                  %v396 = vld [vmem:[%s310 + $0x2a0] sm:$0xff]
                  %397 = vst [vmem:[%s311 + $0x150] sm:$0xff] %v396
                  %v398 = vld [vmem:[%s310 + $0x2b0] sm:$0xff]
                  %399 = vst [vmem:[%s311 + $0x158] sm:$0xff] %v398
                  %v400 = vld [vmem:[%s310 + $0x2c0] sm:$0xff]
                  %401 = vst [vmem:[%s311 + $0x160] sm:$0xff] %v400
                  %v402 = vld [vmem:[%s310 + $0x2d0] sm:$0xff]
                  %403 = vst [vmem:[%s311 + $0x168] sm:$0xff] %v402
                  %v404 = vld [vmem:[%s310 + $0x2e0] sm:$0xff]
                  %405 = vst [vmem:[%s311 + $0x170] sm:$0xff] %v404
                  %v406 = vld [vmem:[%s310 + $0x2f0] sm:$0xff]
                  %407 = vst [vmem:[%s311 + $0x178] sm:$0xff] %v406
                  %v408 = vld [vmem:[%s310 + $0x300] sm:$0xff]
                  %409 = vst [vmem:[%s311 + $0x180] sm:$0xff] %v408
                  %v410 = vld [vmem:[%s310 + $0x310] sm:$0xff]
                  %411 = vst [vmem:[%s311 + $0x188] sm:$0xff] %v410
                  %v412 = vld [vmem:[%s310 + $0x320] sm:$0xff]
                  %413 = vst [vmem:[%s311 + $0x190] sm:$0xff] %v412
                  %v414 = vld [vmem:[%s310 + $0x330] sm:$0xff]
                  %415 = vst [vmem:[%s311 + $0x198] sm:$0xff] %v414
                  %v416 = vld [vmem:[%s310 + $0x340] sm:$0xff]
                  %417 = vst [vmem:[%s311 + $0x1a0] sm:$0xff] %v416
                  %v418 = vld [vmem:[%s310 + $0x350] sm:$0xff]
                  %419 = vst [vmem:[%s311 + $0x1a8] sm:$0xff] %v418
                  %v420 = vld [vmem:[%s310 + $0x360] sm:$0xff]
                  %421 = vst [vmem:[%s311 + $0x1b0] sm:$0xff] %v420
                  %v422 = vld [vmem:[%s310 + $0x370] sm:$0xff]
                  %423 = vst [vmem:[%s311 + $0x1b8] sm:$0xff] %v422
                  %v424 = vld [vmem:[%s310 + $0x380] sm:$0xff]
                  %425 = vst [vmem:[%s311 + $0x1c0] sm:$0xff] %v424
                  %v426 = vld [vmem:[%s310 + $0x390] sm:$0xff]
                  %427 = vst [vmem:[%s311 + $0x1c8] sm:$0xff] %v426
                  %v428 = vld [vmem:[%s310 + $0x3a0] sm:$0xff]
                  %429 = vst [vmem:[%s311 + $0x1d0] sm:$0xff] %v428
                  %v430 = vld [vmem:[%s310 + $0x3b0] sm:$0xff]
                  %431 = vst [vmem:[%s311 + $0x1d8] sm:$0xff] %v430
                  %v432 = vld [vmem:[%s310 + $0x3c0] sm:$0xff]
                  %433 = vst [vmem:[%s311 + $0x1e0] sm:$0xff] %v432
                  %v434 = vld [vmem:[%s310 + $0x3d0] sm:$0xff]
                  %435 = vst [vmem:[%s311 + $0x1e8] sm:$0xff] %v434
                  %v436 = vld [vmem:[%s310 + $0x3e0] sm:$0xff]
                  %437 = vst [vmem:[%s311 + $0x1f0] sm:$0xff] %v436
                  %v438 = vld [vmem:[%s310 + $0x3f0] sm:$0xff]
                  %439 = vst [vmem:[%s311 + $0x1f8] sm:$0xff] %v438
                $region52: #{gqa_forward.5} parent=46 // loop_footer
                  %s309 = sadd.s32 1, %s305
                $region53: #{gqa_forward.5} parent=46 // loop_footer_branch
                  %304 = sbr.rel target = $region49
                $region54: #{gqa_forward.5} parent=46 // loop_exit
                  _
              $region47: #{gqa_forward.5} parent=31 // pred_fallthru
                _
              // Predicated region
              $region55: #{gqa_forward.5} parent=31 // pred_check
                _
              $region56: #{gqa_forward.5} parent=31 // pred_check_branch
                %441 = sbr.rel target = $region58
              $region57: #{gqa_forward.5} parent=31 // pred_region
                _
              $region58: #{gqa_forward.5} parent=31 // pred_fallthru
                _
            $region32: #{gqa_forward.5} parent=27 // pred_fallthru
              _
            // Predicated region
            $region33: #{gqa_forward.5} parent=27 // pred_check
              _
            $region34: #{gqa_forward.5} parent=27 // pred_check_branch
              %163 = sbr.rel target = $region36
            $region35: #{gqa_forward.5} parent=27 // pred_region
              %s165 = ssub.s32 256, 1
              loop: start=0, step=1, limit=1
              $region37: #{gqa_forward.5} parent=35 // loop_pre_header
                _
              $region38: #{gqa_forward.5} parent=35 // loop_header
                %s167 = sphi 0, %s171
                %p168 = scmp.ge.s32.totalorder %s167, 1
                %s172 = sphi %s157, %s157
                %s173 = sphi %s151, %s151
              $region39: #{gqa_forward.5} parent=35 // loop_header_branch
                %170 = sbr.rel (%p168) target = $region43
              $region40: #{gqa_forward.5} parent=35 // loop_body
                %v174 = vld [vmem:[%s172] sm:%s165]
                %175 = vst [vmem:[%s173] sm:%s165] %v174
                %v176 = vld [vmem:[%s172 + $0x10] sm:%s165]
                %177 = vst [vmem:[%s173 + $0x8] sm:%s165] %v176
                %v178 = vld [vmem:[%s172 + $0x20] sm:%s165]
                %179 = vst [vmem:[%s173 + $0x10] sm:%s165] %v178
                %v180 = vld [vmem:[%s172 + $0x30] sm:%s165]
                %181 = vst [vmem:[%s173 + $0x18] sm:%s165] %v180
                %v182 = vld [vmem:[%s172 + $0x40] sm:%s165]
                %183 = vst [vmem:[%s173 + $0x20] sm:%s165] %v182
                %v184 = vld [vmem:[%s172 + $0x50] sm:%s165]
                %185 = vst [vmem:[%s173 + $0x28] sm:%s165] %v184
                %v186 = vld [vmem:[%s172 + $0x60] sm:%s165]
                %187 = vst [vmem:[%s173 + $0x30] sm:%s165] %v186
                %v188 = vld [vmem:[%s172 + $0x70] sm:%s165]
                %189 = vst [vmem:[%s173 + $0x38] sm:%s165] %v188
                %v190 = vld [vmem:[%s172 + $0x80] sm:%s165]
                %191 = vst [vmem:[%s173 + $0x40] sm:%s165] %v190
                %v192 = vld [vmem:[%s172 + $0x90] sm:%s165]
                %193 = vst [vmem:[%s173 + $0x48] sm:%s165] %v192
                %v194 = vld [vmem:[%s172 + $0xa0] sm:%s165]
                %195 = vst [vmem:[%s173 + $0x50] sm:%s165] %v194
                %v196 = vld [vmem:[%s172 + $0xb0] sm:%s165]
                %197 = vst [vmem:[%s173 + $0x58] sm:%s165] %v196
                %v198 = vld [vmem:[%s172 + $0xc0] sm:%s165]
                %199 = vst [vmem:[%s173 + $0x60] sm:%s165] %v198
                %v200 = vld [vmem:[%s172 + $0xd0] sm:%s165]
                %201 = vst [vmem:[%s173 + $0x68] sm:%s165] %v200
                %v202 = vld [vmem:[%s172 + $0xe0] sm:%s165]
                %203 = vst [vmem:[%s173 + $0x70] sm:%s165] %v202
                %v204 = vld [vmem:[%s172 + $0xf0] sm:%s165]
                %205 = vst [vmem:[%s173 + $0x78] sm:%s165] %v204
                %v206 = vld [vmem:[%s172 + $0x100] sm:%s165]
                %207 = vst [vmem:[%s173 + $0x80] sm:%s165] %v206
                %v208 = vld [vmem:[%s172 + $0x110] sm:%s165]
                %209 = vst [vmem:[%s173 + $0x88] sm:%s165] %v208
                %v210 = vld [vmem:[%s172 + $0x120] sm:%s165]
                %211 = vst [vmem:[%s173 + $0x90] sm:%s165] %v210
                %v212 = vld [vmem:[%s172 + $0x130] sm:%s165]
                %213 = vst [vmem:[%s173 + $0x98] sm:%s165] %v212
                %v214 = vld [vmem:[%s172 + $0x140] sm:%s165]
                %215 = vst [vmem:[%s173 + $0xa0] sm:%s165] %v214
                %v216 = vld [vmem:[%s172 + $0x150] sm:%s165]
                %217 = vst [vmem:[%s173 + $0xa8] sm:%s165] %v216
                %v218 = vld [vmem:[%s172 + $0x160] sm:%s165]
                %219 = vst [vmem:[%s173 + $0xb0] sm:%s165] %v218
                %v220 = vld [vmem:[%s172 + $0x170] sm:%s165]
                %221 = vst [vmem:[%s173 + $0xb8] sm:%s165] %v220
                %v222 = vld [vmem:[%s172 + $0x180] sm:%s165]
                %223 = vst [vmem:[%s173 + $0xc0] sm:%s165] %v222
                %v224 = vld [vmem:[%s172 + $0x190] sm:%s165]
                %225 = vst [vmem:[%s173 + $0xc8] sm:%s165] %v224
                %v226 = vld [vmem:[%s172 + $0x1a0] sm:%s165]
                %227 = vst [vmem:[%s173 + $0xd0] sm:%s165] %v226
                %v228 = vld [vmem:[%s172 + $0x1b0] sm:%s165]
                %229 = vst [vmem:[%s173 + $0xd8] sm:%s165] %v228
                %v230 = vld [vmem:[%s172 + $0x1c0] sm:%s165]
                %231 = vst [vmem:[%s173 + $0xe0] sm:%s165] %v230
                %v232 = vld [vmem:[%s172 + $0x1d0] sm:%s165]
                %233 = vst [vmem:[%s173 + $0xe8] sm:%s165] %v232
                %v234 = vld [vmem:[%s172 + $0x1e0] sm:%s165]
                %235 = vst [vmem:[%s173 + $0xf0] sm:%s165] %v234
                %v236 = vld [vmem:[%s172 + $0x1f0] sm:%s165]
                %237 = vst [vmem:[%s173 + $0xf8] sm:%s165] %v236
                %v238 = vld [vmem:[%s172 + $0x200] sm:%s165]
                %239 = vst [vmem:[%s173 + $0x100] sm:%s165] %v238
                %v240 = vld [vmem:[%s172 + $0x210] sm:%s165]
                %241 = vst [vmem:[%s173 + $0x108] sm:%s165] %v240
                %v242 = vld [vmem:[%s172 + $0x220] sm:%s165]
                %243 = vst [vmem:[%s173 + $0x110] sm:%s165] %v242
                %v244 = vld [vmem:[%s172 + $0x230] sm:%s165]
                %245 = vst [vmem:[%s173 + $0x118] sm:%s165] %v244
                %v246 = vld [vmem:[%s172 + $0x240] sm:%s165]
                %247 = vst [vmem:[%s173 + $0x120] sm:%s165] %v246
                %v248 = vld [vmem:[%s172 + $0x250] sm:%s165]
                %249 = vst [vmem:[%s173 + $0x128] sm:%s165] %v248
                %v250 = vld [vmem:[%s172 + $0x260] sm:%s165]
                %251 = vst [vmem:[%s173 + $0x130] sm:%s165] %v250
                %v252 = vld [vmem:[%s172 + $0x270] sm:%s165]
                %253 = vst [vmem:[%s173 + $0x138] sm:%s165] %v252
                %v254 = vld [vmem:[%s172 + $0x280] sm:%s165]
                %255 = vst [vmem:[%s173 + $0x140] sm:%s165] %v254
                %v256 = vld [vmem:[%s172 + $0x290] sm:%s165]
                %257 = vst [vmem:[%s173 + $0x148] sm:%s165] %v256
                %v258 = vld [vmem:[%s172 + $0x2a0] sm:%s165]
                %259 = vst [vmem:[%s173 + $0x150] sm:%s165] %v258
                %v260 = vld [vmem:[%s172 + $0x2b0] sm:%s165]
                %261 = vst [vmem:[%s173 + $0x158] sm:%s165] %v260
                %v262 = vld [vmem:[%s172 + $0x2c0] sm:%s165]
                %263 = vst [vmem:[%s173 + $0x160] sm:%s165] %v262
                %v264 = vld [vmem:[%s172 + $0x2d0] sm:%s165]
                %265 = vst [vmem:[%s173 + $0x168] sm:%s165] %v264
                %v266 = vld [vmem:[%s172 + $0x2e0] sm:%s165]
                %267 = vst [vmem:[%s173 + $0x170] sm:%s165] %v266
                %v268 = vld [vmem:[%s172 + $0x2f0] sm:%s165]
                %269 = vst [vmem:[%s173 + $0x178] sm:%s165] %v268
                %v270 = vld [vmem:[%s172 + $0x300] sm:%s165]
                %271 = vst [vmem:[%s173 + $0x180] sm:%s165] %v270
                %v272 = vld [vmem:[%s172 + $0x310] sm:%s165]
                %273 = vst [vmem:[%s173 + $0x188] sm:%s165] %v272
                %v274 = vld [vmem:[%s172 + $0x320] sm:%s165]
                %275 = vst [vmem:[%s173 + $0x190] sm:%s165] %v274
                %v276 = vld [vmem:[%s172 + $0x330] sm:%s165]
                %277 = vst [vmem:[%s173 + $0x198] sm:%s165] %v276
                %v278 = vld [vmem:[%s172 + $0x340] sm:%s165]
                %279 = vst [vmem:[%s173 + $0x1a0] sm:%s165] %v278
                %v280 = vld [vmem:[%s172 + $0x350] sm:%s165]
                %281 = vst [vmem:[%s173 + $0x1a8] sm:%s165] %v280
                %v282 = vld [vmem:[%s172 + $0x360] sm:%s165]
                %283 = vst [vmem:[%s173 + $0x1b0] sm:%s165] %v282
                %v284 = vld [vmem:[%s172 + $0x370] sm:%s165]
                %285 = vst [vmem:[%s173 + $0x1b8] sm:%s165] %v284
                %v286 = vld [vmem:[%s172 + $0x380] sm:%s165]
                %287 = vst [vmem:[%s173 + $0x1c0] sm:%s165] %v286
                %v288 = vld [vmem:[%s172 + $0x390] sm:%s165]
                %289 = vst [vmem:[%s173 + $0x1c8] sm:%s165] %v288
                %v290 = vld [vmem:[%s172 + $0x3a0] sm:%s165]
                %291 = vst [vmem:[%s173 + $0x1d0] sm:%s165] %v290
                %v292 = vld [vmem:[%s172 + $0x3b0] sm:%s165]
                %293 = vst [vmem:[%s173 + $0x1d8] sm:%s165] %v292
                %v294 = vld [vmem:[%s172 + $0x3c0] sm:%s165]
                %295 = vst [vmem:[%s173 + $0x1e0] sm:%s165] %v294
                %v296 = vld [vmem:[%s172 + $0x3d0] sm:%s165]
                %297 = vst [vmem:[%s173 + $0x1e8] sm:%s165] %v296
                %v298 = vld [vmem:[%s172 + $0x3e0] sm:%s165]
                %299 = vst [vmem:[%s173 + $0x1f0] sm:%s165] %v298
                %v300 = vld [vmem:[%s172 + $0x3f0] sm:%s165]
                %301 = vst [vmem:[%s173 + $0x1f8] sm:%s165] %v300
              $region41: #{gqa_forward.5} parent=35 // loop_footer
                %s171 = sadd.s32 1, %s167
              $region42: #{gqa_forward.5} parent=35 // loop_footer_branch
                %166 = sbr.rel target = $region38
              $region43: #{gqa_forward.5} parent=35 // loop_exit
                _
            $region36: #{gqa_forward.5} parent=27 // pred_fallthru
              _
          $region28: #{gqa_forward.5} parent=23 // pred_fallthru
            _
          %442 = vnop
        $region24: #{gqa_forward.5} parent=19 // pred_fallthru
          _
      $region20: #{gqa_forward.5} parent=5 // pred_fallthru
        _
      %p443 = scmp.le.s32.totalorder 1, %s8
      %p444 = scmp.lt.s32.totalorder %s8, 3
      %p445 = pnand %p443, %p444
      %p446 = pneg %p445
      // Predicated region
      $region59: #{gqa_forward.5} parent=5 // pred_check
        _
      $region60: #{gqa_forward.5} parent=5 // pred_check_branch
        %448 = sbr.rel (%p445) target = $region62
      $region61: #{gqa_forward.5} parent=5 // pred_region
        %s449 = ssub.s32 %s8, 1
        %s450 = sand.u32 %s70, 1
        %s451 = sand.u32 %s70, 1
        %s452 = smul.addr %s451, 512
        %s453 = scalar_lea.vmem [#allocation3], %s452
        // Predicated region
        $region63: #{gqa_forward.5} parent=61 // pred_check
          %p454 = pneg %p83
        $region64: #{gqa_forward.5} parent=61 // pred_check_branch
          %456 = sbr.rel (%p454) target = $region66
        $region65: #{gqa_forward.5} parent=61 // pred_region
          _
        $region66: #{gqa_forward.5} parent=61 // pred_fallthru
          _
        %s457 = smul.u32 2, %s18
        %s458 = smul.u32 4, %s20
        %p459 = scmp.lt.s32.totalorder %s457, 1
        %s460 = scalar_select %p459, %s457, 1
        %p461 = scmp.lt.s32.totalorder %s458, 3
        %s462 = scalar_select %p461, %s458, 3
        %s463 = smul.addr %s460, 4
        %s464 = sadd.s32 %s462, %s463
        %s465 = smul.addr %s464, 4
        %s466 = scalar_lea.vmem %s0, %s465
        %p467 = pneg %p55
        %p468 = pneg %p52
        %s469 = sand.u32 %s70, 1
        %s470 = sand.u32 %s70, 1
        %s471 = smul.addr %s470, 512
        %s472 = scalar_lea.vmem [#allocation3], %s471
        %p473 = pneg %p83
        %p474 = pneg %p80
        %p475 = pneg %p111
        %p476 = pneg %p108
        %s477 = sand.u32 %s98, 1
        %s478 = sand.u32 %s98, 1
        %s479 = smul.addr %s478, 16
        %s480 = scalar_lea.vmem [#allocation4], %s479
        %s481 = smul.u32 2, %s18
        %s482 = smul.u32 4, %s20
        %p483 = scmp.lt.s32.totalorder %s481, 1
        %s484 = scalar_select %p483, %s481, 1
        %p485 = scmp.lt.s32.totalorder %s482, 3
        %s486 = scalar_select %p485, %s482, 3
        %s487 = smul.addr %s484, 4
        %s488 = sadd.s32 %s486, %s487
        %s489 = smul.addr %s488, 4
        %s490 = scalar_lea.vmem %s0, %s489
        %s491 = smul.u32 2, %s18
        %s492 = smul.u32 4, %s20
        %s493 = smul.u32 64, %s20
        %s494 = smul.u32 2, %s19
        %s495 = smul.u32 2, %s18
        %s496 = smul.u32 2, %s19
        %p497 = scmp.eq.s32.totalorder %s20, 0
        // Predicated region
        $region67: #{gqa_forward.5} parent=61 // pred_check
          %p498 = pneg %p497
        $region68: #{gqa_forward.5} parent=61 // pred_check_branch
          %500 = sbr.rel (%p498) target = $region70
        $region69: #{gqa_forward.5} parent=61 // pred_region
          %501 = vst [vmem:[#allocation2] sm:$0xff] 0.0
          %502 = vst [vmem:[#allocation2 + $0x8] sm:$0xff] 0.0
          %503 = vst [vmem:[#allocation2 + $0x10] sm:$0xff] 0.0
          %504 = vst [vmem:[#allocation2 + $0x18] sm:$0xff] 0.0
        $region70: #{gqa_forward.5} parent=61 // pred_fallthru
          _
        %v505 = vld [vmem:[#allocation2] sm:$0xff]
        %v506 = vld [vmem:[#allocation2 + $0x8] sm:$0xff]
        %v507 = vld [vmem:[#allocation2 + $0x10] sm:$0xff]
        %v508 = vld [vmem:[#allocation2 + $0x18] sm:$0xff]
        %v509 = vld [vmem:[%s490] sm:$0xff]
        %v510 = vld [vmem:[%s490 + $0x8] sm:$0xff]
        %v511 = vld [vmem:[%s490 + $0x10] sm:$0xff]
        %v512 = vld [vmem:[%s490 + $0x18] sm:$0xff]
        %v513 = vld [vmem:[%s453] sm:$0xff]
        %v514 = vld [vmem:[%s453 + $0x8] sm:$0xff]
        %v515 = vld [vmem:[%s453 + $0x10] sm:$0xff]
        %v516 = vld [vmem:[%s453 + $0x18] sm:$0xff]
        %v517 = vld [vmem:[%s453 + $0x20] sm:$0xff]
        %v518 = vld [vmem:[%s453 + $0x28] sm:$0xff]
        %v519 = vld [vmem:[%s453 + $0x30] sm:$0xff]
        %v520 = vld [vmem:[%s453 + $0x38] sm:$0xff]
        %v521 = vld [vmem:[%s453 + $0x40] sm:$0xff]
        %v522 = vld [vmem:[%s453 + $0x48] sm:$0xff]
        %v523 = vld [vmem:[%s453 + $0x50] sm:$0xff]
        %v524 = vld [vmem:[%s453 + $0x58] sm:$0xff]
        %v525 = vld [vmem:[%s453 + $0x60] sm:$0xff]
        %v526 = vld [vmem:[%s453 + $0x68] sm:$0xff]
        %v527 = vld [vmem:[%s453 + $0x70] sm:$0xff]
        %v528 = vld [vmem:[%s453 + $0x78] sm:$0xff]
        %v529 = vld [vmem:[%s453 + $0x80] sm:$0xff]
        %v530 = vld [vmem:[%s453 + $0x88] sm:$0xff]
        %v531 = vld [vmem:[%s453 + $0x90] sm:$0xff]
        %v532 = vld [vmem:[%s453 + $0x98] sm:$0xff]
        %v533 = vld [vmem:[%s453 + $0xa0] sm:$0xff]
        %v534 = vld [vmem:[%s453 + $0xa8] sm:$0xff]
        %v535 = vld [vmem:[%s453 + $0xb0] sm:$0xff]
        %v536 = vld [vmem:[%s453 + $0xb8] sm:$0xff]
        %v537 = vld [vmem:[%s453 + $0xc0] sm:$0xff]
        %v538 = vld [vmem:[%s453 + $0xc8] sm:$0xff]
        %v539 = vld [vmem:[%s453 + $0xd0] sm:$0xff]
        %v540 = vld [vmem:[%s453 + $0xd8] sm:$0xff]
        %v541 = vld [vmem:[%s453 + $0xe0] sm:$0xff]
        %v542 = vld [vmem:[%s453 + $0xe8] sm:$0xff]
        %v543 = vld [vmem:[%s453 + $0xf0] sm:$0xff]
        %v544 = vld [vmem:[%s453 + $0xf8] sm:$0xff]
        %v545 = vld [vmem:[%s453 + $0x100] sm:$0xff]
        %v546 = vld [vmem:[%s453 + $0x108] sm:$0xff]
        %v547 = vld [vmem:[%s453 + $0x110] sm:$0xff]
        %v548 = vld [vmem:[%s453 + $0x118] sm:$0xff]
        %v549 = vld [vmem:[%s453 + $0x120] sm:$0xff]
        %v550 = vld [vmem:[%s453 + $0x128] sm:$0xff]
        %v551 = vld [vmem:[%s453 + $0x130] sm:$0xff]
        %v552 = vld [vmem:[%s453 + $0x138] sm:$0xff]
        %v553 = vld [vmem:[%s453 + $0x140] sm:$0xff]
        %v554 = vld [vmem:[%s453 + $0x148] sm:$0xff]
        %v555 = vld [vmem:[%s453 + $0x150] sm:$0xff]
        %v556 = vld [vmem:[%s453 + $0x158] sm:$0xff]
        %v557 = vld [vmem:[%s453 + $0x160] sm:$0xff]
        %v558 = vld [vmem:[%s453 + $0x168] sm:$0xff]
        %v559 = vld [vmem:[%s453 + $0x170] sm:$0xff]
        %v560 = vld [vmem:[%s453 + $0x178] sm:$0xff]
        %v561 = vld [vmem:[%s453 + $0x180] sm:$0xff]
        %v562 = vld [vmem:[%s453 + $0x188] sm:$0xff]
        %v563 = vld [vmem:[%s453 + $0x190] sm:$0xff]
        %v564 = vld [vmem:[%s453 + $0x198] sm:$0xff]
        %v565 = vld [vmem:[%s453 + $0x1a0] sm:$0xff]
        %v566 = vld [vmem:[%s453 + $0x1a8] sm:$0xff]
        %v567 = vld [vmem:[%s453 + $0x1b0] sm:$0xff]
        %v568 = vld [vmem:[%s453 + $0x1b8] sm:$0xff]
        %v569 = vld [vmem:[%s453 + $0x1c0] sm:$0xff]
        %v570 = vld [vmem:[%s453 + $0x1c8] sm:$0xff]
        %v571 = vld [vmem:[%s453 + $0x1d0] sm:$0xff]
        %v572 = vld [vmem:[%s453 + $0x1d8] sm:$0xff]
        %v573 = vld [vmem:[%s453 + $0x1e0] sm:$0xff]
        %v574 = vld [vmem:[%s453 + $0x1e8] sm:$0xff]
        %v575 = vld [vmem:[%s453 + $0x1f0] sm:$0xff]
        %v576 = vld [vmem:[%s453 + $0x1f8] sm:$0xff]
        %v581 = vunpack.c.l.b16 %v509
        %v582 = vunpack.c.h.b16 %v509
        %v583 = vunpack.c.l.b16 %v510
        %v584 = vunpack.c.h.b16 %v510
        %v585 = vunpack.c.l.b16 %v511
        %v586 = vunpack.c.h.b16 %v511
        %v587 = vunpack.c.l.b16 %v512
        %v588 = vunpack.c.h.b16 %v512
        %v589 = vpack.c.b16 %v585, %v581
        %v590 = vpack.c.b16 %v586, %v582
        %v591 = vpack.c.b16 %v587, %v583
        %v592 = vpack.c.b16 %v588, %v584
        %v661 = vunpack.c.l.b16 %v513
        %v662 = vunpack.c.h.b16 %v513
        %v663 = vunpack.c.l.b16 %v514
        %v664 = vunpack.c.h.b16 %v514
        %v665 = vunpack.c.l.b16 %v515
        %v666 = vunpack.c.h.b16 %v515
        %v667 = vunpack.c.l.b16 %v516
        %v668 = vunpack.c.h.b16 %v516
        %v669 = vunpack.c.l.b16 %v517
        %v670 = vunpack.c.h.b16 %v517
        %v671 = vunpack.c.l.b16 %v518
        %v672 = vunpack.c.h.b16 %v518
        %v673 = vunpack.c.l.b16 %v519
        %v674 = vunpack.c.h.b16 %v519
        %v675 = vunpack.c.l.b16 %v520
        %v676 = vunpack.c.h.b16 %v520
        %v677 = vunpack.c.l.b16 %v521
        %v678 = vunpack.c.h.b16 %v521
        %v679 = vunpack.c.l.b16 %v522
        %v680 = vunpack.c.h.b16 %v522
        %v681 = vunpack.c.l.b16 %v523
        %v682 = vunpack.c.h.b16 %v523
        %v683 = vunpack.c.l.b16 %v524
        %v684 = vunpack.c.h.b16 %v524
        %v685 = vunpack.c.l.b16 %v525
        %v686 = vunpack.c.h.b16 %v525
        %v687 = vunpack.c.l.b16 %v526
        %v688 = vunpack.c.h.b16 %v526
        %v689 = vunpack.c.l.b16 %v527
        %v690 = vunpack.c.h.b16 %v527
        %v691 = vunpack.c.l.b16 %v528
        %v692 = vunpack.c.h.b16 %v528
        %v693 = vunpack.c.l.b16 %v529
        %v694 = vunpack.c.h.b16 %v529
        %v695 = vunpack.c.l.b16 %v530
        %v696 = vunpack.c.h.b16 %v530
        %v697 = vunpack.c.l.b16 %v531
        %v698 = vunpack.c.h.b16 %v531
        %v699 = vunpack.c.l.b16 %v532
        %v700 = vunpack.c.h.b16 %v532
        %v701 = vunpack.c.l.b16 %v533
        %v702 = vunpack.c.h.b16 %v533
        %v703 = vunpack.c.l.b16 %v534
        %v704 = vunpack.c.h.b16 %v534
        %v705 = vunpack.c.l.b16 %v535
        %v706 = vunpack.c.h.b16 %v535
        %v707 = vunpack.c.l.b16 %v536
        %v708 = vunpack.c.h.b16 %v536
        %v709 = vunpack.c.l.b16 %v537
        %v710 = vunpack.c.h.b16 %v537
        %v711 = vunpack.c.l.b16 %v538
        %v712 = vunpack.c.h.b16 %v538
        %v713 = vunpack.c.l.b16 %v539
        %v714 = vunpack.c.h.b16 %v539
        %v715 = vunpack.c.l.b16 %v540
        %v716 = vunpack.c.h.b16 %v540
        %v717 = vunpack.c.l.b16 %v541
        %v718 = vunpack.c.h.b16 %v541
        %v719 = vunpack.c.l.b16 %v542
        %v720 = vunpack.c.h.b16 %v542
        %v721 = vunpack.c.l.b16 %v543
        %v722 = vunpack.c.h.b16 %v543
        %v723 = vunpack.c.l.b16 %v544
        %v724 = vunpack.c.h.b16 %v544
        %v725 = vunpack.c.l.b16 %v545
        %v726 = vunpack.c.h.b16 %v545
        %v727 = vunpack.c.l.b16 %v546
        %v728 = vunpack.c.h.b16 %v546
        %v729 = vunpack.c.l.b16 %v547
        %v730 = vunpack.c.h.b16 %v547
        %v731 = vunpack.c.l.b16 %v548
        %v732 = vunpack.c.h.b16 %v548
        %v733 = vunpack.c.l.b16 %v549
        %v734 = vunpack.c.h.b16 %v549
        %v735 = vunpack.c.l.b16 %v550
        %v736 = vunpack.c.h.b16 %v550
        %v737 = vunpack.c.l.b16 %v551
        %v738 = vunpack.c.h.b16 %v551
        %v739 = vunpack.c.l.b16 %v552
        %v740 = vunpack.c.h.b16 %v552
        %v741 = vunpack.c.l.b16 %v553
        %v742 = vunpack.c.h.b16 %v553
        %v743 = vunpack.c.l.b16 %v554
        %v744 = vunpack.c.h.b16 %v554
        %v745 = vunpack.c.l.b16 %v555
        %v746 = vunpack.c.h.b16 %v555
        %v747 = vunpack.c.l.b16 %v556
        %v748 = vunpack.c.h.b16 %v556
        %v749 = vunpack.c.l.b16 %v557
        %v750 = vunpack.c.h.b16 %v557
        %v751 = vunpack.c.l.b16 %v558
        %v752 = vunpack.c.h.b16 %v558
        %v753 = vunpack.c.l.b16 %v559
        %v754 = vunpack.c.h.b16 %v559
        %v755 = vunpack.c.l.b16 %v560
        %v756 = vunpack.c.h.b16 %v560
        %v757 = vunpack.c.l.b16 %v561
        %v758 = vunpack.c.h.b16 %v561
        %v759 = vunpack.c.l.b16 %v562
        %v760 = vunpack.c.h.b16 %v562
        %v761 = vunpack.c.l.b16 %v563
        %v762 = vunpack.c.h.b16 %v563
        %v763 = vunpack.c.l.b16 %v564
        %v764 = vunpack.c.h.b16 %v564
        %v765 = vunpack.c.l.b16 %v565
        %v766 = vunpack.c.h.b16 %v565
        %v767 = vunpack.c.l.b16 %v566
        %v768 = vunpack.c.h.b16 %v566
        %v769 = vunpack.c.l.b16 %v567
        %v770 = vunpack.c.h.b16 %v567
        %v771 = vunpack.c.l.b16 %v568
        %v772 = vunpack.c.h.b16 %v568
        %v773 = vunpack.c.l.b16 %v569
        %v774 = vunpack.c.h.b16 %v569
        %v775 = vunpack.c.l.b16 %v570
        %v776 = vunpack.c.h.b16 %v570
        %v777 = vunpack.c.l.b16 %v571
        %v778 = vunpack.c.h.b16 %v571
        %v779 = vunpack.c.l.b16 %v572
        %v780 = vunpack.c.h.b16 %v572
        %v781 = vunpack.c.l.b16 %v573
        %v782 = vunpack.c.h.b16 %v573
        %v783 = vunpack.c.l.b16 %v574
        %v784 = vunpack.c.h.b16 %v574
        %v785 = vunpack.c.l.b16 %v575
        %v786 = vunpack.c.h.b16 %v575
        %v787 = vunpack.c.l.b16 %v576
        %v788 = vunpack.c.h.b16 %v576
        %v789 = vpack.c.b16 %v663, %v661
        %v790 = vpack.c.b16 %v664, %v662
        %v791 = vpack.c.b16 %v667, %v665
        %v792 = vpack.c.b16 %v668, %v666
        %v793 = vpack.c.b16 %v671, %v669
        %v794 = vpack.c.b16 %v672, %v670
        %v795 = vpack.c.b16 %v675, %v673
        %v796 = vpack.c.b16 %v676, %v674
        %v797 = vpack.c.b16 %v679, %v677
        %v798 = vpack.c.b16 %v680, %v678
        %v799 = vpack.c.b16 %v683, %v681
        %v800 = vpack.c.b16 %v684, %v682
        %v801 = vpack.c.b16 %v687, %v685
        %v802 = vpack.c.b16 %v688, %v686
        %v803 = vpack.c.b16 %v691, %v689
        %v804 = vpack.c.b16 %v692, %v690
        %v805 = vpack.c.b16 %v695, %v693
        %v806 = vpack.c.b16 %v696, %v694
        %v807 = vpack.c.b16 %v699, %v697
        %v808 = vpack.c.b16 %v700, %v698
        %v809 = vpack.c.b16 %v703, %v701
        %v810 = vpack.c.b16 %v704, %v702
        %v811 = vpack.c.b16 %v707, %v705
        %v812 = vpack.c.b16 %v708, %v706
        %v813 = vpack.c.b16 %v711, %v709
        %v814 = vpack.c.b16 %v712, %v710
        %v815 = vpack.c.b16 %v715, %v713
        %v816 = vpack.c.b16 %v716, %v714
        %v817 = vpack.c.b16 %v719, %v717
        %v818 = vpack.c.b16 %v720, %v718
        %v819 = vpack.c.b16 %v723, %v721
        %v820 = vpack.c.b16 %v724, %v722
        %v821 = vpack.c.b16 %v727, %v725
        %v822 = vpack.c.b16 %v728, %v726
        %v823 = vpack.c.b16 %v731, %v729
        %v824 = vpack.c.b16 %v732, %v730
        %v825 = vpack.c.b16 %v735, %v733
        %v826 = vpack.c.b16 %v736, %v734
        %v827 = vpack.c.b16 %v739, %v737
        %v828 = vpack.c.b16 %v740, %v738
        %v829 = vpack.c.b16 %v743, %v741
        %v830 = vpack.c.b16 %v744, %v742
        %v831 = vpack.c.b16 %v747, %v745
        %v832 = vpack.c.b16 %v748, %v746
        %v833 = vpack.c.b16 %v751, %v749
        %v834 = vpack.c.b16 %v752, %v750
        %v835 = vpack.c.b16 %v755, %v753
        %v836 = vpack.c.b16 %v756, %v754
        %v837 = vpack.c.b16 %v759, %v757
        %v838 = vpack.c.b16 %v760, %v758
        %v839 = vpack.c.b16 %v763, %v761
        %v840 = vpack.c.b16 %v764, %v762
        %v841 = vpack.c.b16 %v767, %v765
        %v842 = vpack.c.b16 %v768, %v766
        %v843 = vpack.c.b16 %v771, %v769
        %v844 = vpack.c.b16 %v772, %v770
        %v845 = vpack.c.b16 %v775, %v773
        %v846 = vpack.c.b16 %v776, %v774
        %v847 = vpack.c.b16 %v779, %v777
        %v848 = vpack.c.b16 %v780, %v778
        %v849 = vpack.c.b16 %v783, %v781
        %v850 = vpack.c.b16 %v784, %v782
        %v851 = vpack.c.b16 %v787, %v785
        %v852 = vpack.c.b16 %v788, %v786
        %917 = vmatpush.bf16.msra.mxu0 %v803
        %918 = vmatpush.bf16.msra.mxu0 %v801
        %919 = vmatpush.bf16.msra.mxu0 %v799
        %920 = vmatpush.bf16.msra.mxu0 %v797
        %921 = vmatpush.bf16.msra.mxu0 %v795
        %922 = vmatpush.bf16.msra.mxu0 %v793
        %923 = vmatpush.bf16.msra.mxu0 %v791
        %924 = vmatpush.bf16.msra.mxu0 %v789
        %925 = vmatmul.bf16.gmra.mxu0 %v589
        %v926 = vpop.f32.mrf.mxu0
        %v927 = vadd.f32 0.0, %v926
        %v928 = vpop.f32.mrf.mxu0
        %v929 = vadd.f32 0.0, %v928
        %930 = vdwg.mxu0
        %931 = vmatpush.bf16.msra.mxu0 %v819
        %932 = vmatpush.bf16.msra.mxu0 %v817
        %933 = vmatpush.bf16.msra.mxu0 %v815
        %934 = vmatpush.bf16.msra.mxu0 %v813
        %935 = vmatpush.bf16.msra.mxu0 %v811
        %936 = vmatpush.bf16.msra.mxu0 %v809
        %937 = vmatpush.bf16.msra.mxu0 %v807
        %938 = vmatpush.bf16.msra.mxu0 %v805
        %939 = vmatmul.bf16.gmra.mxu0 %v590
        %v940 = vpop.f32.mrf.mxu0
        %v941 = vadd.f32 %v927, %v940
        %v942 = vpop.f32.mrf.mxu0
        %v943 = vadd.f32 %v929, %v942
        %944 = vdwg.mxu0
        %945 = vmatpush.bf16.msra.mxu0 %v835
        %946 = vmatpush.bf16.msra.mxu0 %v833
        %947 = vmatpush.bf16.msra.mxu0 %v831
        %948 = vmatpush.bf16.msra.mxu0 %v829
        %949 = vmatpush.bf16.msra.mxu0 %v827
        %950 = vmatpush.bf16.msra.mxu0 %v825
        %951 = vmatpush.bf16.msra.mxu0 %v823
        %952 = vmatpush.bf16.msra.mxu0 %v821
        %953 = vmatmul.bf16.gmra.mxu0 %v591
        %v954 = vpop.f32.mrf.mxu0
        %v955 = vadd.f32 %v941, %v954
        %v956 = vpop.f32.mrf.mxu0
        %v957 = vadd.f32 %v943, %v956
        %958 = vdwg.mxu0
        %959 = vmatpush.bf16.msra.mxu0 %v851
        %960 = vmatpush.bf16.msra.mxu0 %v849
        %961 = vmatpush.bf16.msra.mxu0 %v847
        %962 = vmatpush.bf16.msra.mxu0 %v845
        %963 = vmatpush.bf16.msra.mxu0 %v843
        %964 = vmatpush.bf16.msra.mxu0 %v841
        %965 = vmatpush.bf16.msra.mxu0 %v839
        %966 = vmatpush.bf16.msra.mxu0 %v837
        %967 = vmatmul.bf16.gmra.mxu0 %v592
        %v968 = vpop.f32.mrf.mxu0
        %v969 = vadd.f32 %v955, %v968
        %v970 = vpop.f32.mrf.mxu0
        %v971 = vadd.f32 %v957, %v970
        %972 = vdwg.mxu0
        %973 = vmatpush.bf16.msra.mxu0 %v804
        %974 = vmatpush.bf16.msra.mxu0 %v802
        %975 = vmatpush.bf16.msra.mxu0 %v800
        %976 = vmatpush.bf16.msra.mxu0 %v798
        %977 = vmatpush.bf16.msra.mxu0 %v796
        %978 = vmatpush.bf16.msra.mxu0 %v794
        %979 = vmatpush.bf16.msra.mxu0 %v792
        %980 = vmatpush.bf16.msra.mxu0 %v790
        %981 = vmatmul.bf16.gmra.mxu0 %v589
        %v982 = vpop.f32.mrf.mxu0
        %v983 = vadd.f32 0.0, %v982
        %v984 = vpop.f32.mrf.mxu0
        %v985 = vadd.f32 0.0, %v984
        %986 = vdwg.mxu0
        %987 = vmatpush.bf16.msra.mxu0 %v820
        %988 = vmatpush.bf16.msra.mxu0 %v818
        %989 = vmatpush.bf16.msra.mxu0 %v816
        %990 = vmatpush.bf16.msra.mxu0 %v814
        %991 = vmatpush.bf16.msra.mxu0 %v812
        %992 = vmatpush.bf16.msra.mxu0 %v810
        %993 = vmatpush.bf16.msra.mxu0 %v808
        %994 = vmatpush.bf16.msra.mxu0 %v806
        %995 = vmatmul.bf16.gmra.mxu0 %v590
        %v996 = vpop.f32.mrf.mxu0
        %v997 = vadd.f32 %v983, %v996
        %v998 = vpop.f32.mrf.mxu0
        %v999 = vadd.f32 %v985, %v998
        %1000 = vdwg.mxu0
        %1001 = vmatpush.bf16.msra.mxu0 %v836
        %1002 = vmatpush.bf16.msra.mxu0 %v834
        %1003 = vmatpush.bf16.msra.mxu0 %v832
        %1004 = vmatpush.bf16.msra.mxu0 %v830
        %1005 = vmatpush.bf16.msra.mxu0 %v828
        %1006 = vmatpush.bf16.msra.mxu0 %v826
        %1007 = vmatpush.bf16.msra.mxu0 %v824
        %1008 = vmatpush.bf16.msra.mxu0 %v822
        %1009 = vmatmul.bf16.gmra.mxu0 %v591
        %v1010 = vpop.f32.mrf.mxu0
        %v1011 = vadd.f32 %v997, %v1010
        %v1012 = vpop.f32.mrf.mxu0
        %v1013 = vadd.f32 %v999, %v1012
        %1014 = vdwg.mxu0
        %1015 = vmatpush.bf16.msra.mxu0 %v852
        %1016 = vmatpush.bf16.msra.mxu0 %v850
        %1017 = vmatpush.bf16.msra.mxu0 %v848
        %1018 = vmatpush.bf16.msra.mxu0 %v846
        %1019 = vmatpush.bf16.msra.mxu0 %v844
        %1020 = vmatpush.bf16.msra.mxu0 %v842
        %1021 = vmatpush.bf16.msra.mxu0 %v840
        %1022 = vmatpush.bf16.msra.mxu0 %v838
        %1023 = vmatmul.bf16.gmra.mxu0 %v592
        %v1024 = vpop.f32.mrf.mxu0
        %v1025 = vadd.f32 %v1011, %v1024
        %v1026 = vpop.f32.mrf.mxu0
        %v1027 = vadd.f32 %v1013, %v1026
        %1028 = vdwg.mxu0
        %v1029 = vadd.f32 %v505, %v969
        %v1030 = vadd.f32 %v506, %v1025
        %v1031 = vadd.f32 %v507, %v971
        %v1032 = vadd.f32 %v508, %v1027
        %1033 = vst [vmem:[#allocation2] sm:$0xff] %v1029
        %1034 = vst [vmem:[#allocation2 + $0x8] sm:$0xff] %v1030
        %1035 = vst [vmem:[#allocation2 + $0x10] sm:$0xff] %v1031
        %1036 = vst [vmem:[#allocation2 + $0x18] sm:$0xff] %v1032
        // Predicated region
        $region71: #{gqa_forward.5} parent=61 // pred_check
          %p1037 = pneg %p497
        $region72: #{gqa_forward.5} parent=61 // pred_check_branch
          %1039 = sbr.rel (%p1037) target = $region74
        $region73: #{gqa_forward.5} parent=61 // pred_region
          %v1040 = vld [vmem:[#allocation2] sm:$0xff]
          %v1041 = vld [vmem:[#allocation2 + $0x8] sm:$0xff]
          %v1042 = vld [vmem:[#allocation2 + $0x10] sm:$0xff]
          %v1043 = vld [vmem:[#allocation2 + $0x18] sm:$0xff]
          %v1044 = vpack.c.bf16 %v1041, %v1040
          %v1045 = vpack.c.bf16 %v1043, %v1042
          %1046 = vst [vmem:[%s480] sm:$0xff] %v1044
          %1047 = vst [vmem:[%s480 + $0x8] sm:$0xff] %v1045
        $region74: #{gqa_forward.5} parent=61 // pred_fallthru
          _
        %s1048 = sand.u32 %s98, 1
        %s1049 = sand.u32 %s98, 1
        %s1050 = smul.addr %s1049, 16
        %s1051 = scalar_lea.vmem [#allocation4], %s1050
        // Predicated region
        $region75: #{gqa_forward.5} parent=61 // pred_check
          %p1052 = pneg %p108
        $region76: #{gqa_forward.5} parent=61 // pred_check_branch
          %1054 = sbr.rel (%p1052) target = $region78
        $region77: #{gqa_forward.5} parent=61 // pred_region
          %s1055 = smul.u32 2, %s18
          %s1056 = smul.u32 2, %s19
          %s1057 = smul.addr %s1055, 4
          %s1058 = sadd.s32 %s1056, %s1057
          %s1059 = smul.addr %s1058, 4
          %s1060 = scalar_lea.vmem %s2, %s1059
          // Predicated region
          $region79: #{gqa_forward.5} parent=77 // pred_check
            _
          $region80: #{gqa_forward.5} parent=77 // pred_check_branch
            %1062 = sbr.rel (0) target = $region82
          $region81: #{gqa_forward.5} parent=77 // pred_region
            // Predicated region
            $region83: #{gqa_forward.5} parent=81 // pred_check
              _
            $region84: #{gqa_forward.5} parent=81 // pred_check_branch
              %1064 = sbr.rel (0) target = $region86
            $region85: #{gqa_forward.5} parent=81 // pred_region
              // Predicated region
              $region98: #{gqa_forward.5} parent=85 // pred_check
                _
              $region99: #{gqa_forward.5} parent=85 // pred_check_branch
                %1082 = sbr.rel (0) target = $region101
              $region100: #{gqa_forward.5} parent=85 // pred_region
                loop: start=0, step=1, limit=1
                $region102: #{gqa_forward.5} parent=100 // loop_pre_header
                  _
                $region103: #{gqa_forward.5} parent=100 // loop_header
                  %s1084 = sphi 0, %s1088
                  %p1085 = scmp.ge.s32.totalorder %s1084, 1
                  %s1089 = sphi %s1051, %s1051
                  %s1090 = sphi %s1060, %s1060
                $region104: #{gqa_forward.5} parent=100 // loop_header_branch
                  %1087 = sbr.rel (%p1085) target = $region108
                $region105: #{gqa_forward.5} parent=100 // loop_body
                  %v1091 = vld [vmem:[%s1089] sm:$0xff]
                  %1092 = vst [vmem:[%s1090] sm:$0xff] %v1091
                  %v1093 = vld [vmem:[%s1089 + $0x8] sm:$0xff]
                  %1094 = vst [vmem:[%s1090 + $0x10] sm:$0xff] %v1093
                $region106: #{gqa_forward.5} parent=100 // loop_footer
                  %s1088 = sadd.s32 1, %s1084
                $region107: #{gqa_forward.5} parent=100 // loop_footer_branch
                  %1083 = sbr.rel target = $region103
                $region108: #{gqa_forward.5} parent=100 // loop_exit
                  _
              $region101: #{gqa_forward.5} parent=85 // pred_fallthru
                _
              // Predicated region
              $region109: #{gqa_forward.5} parent=85 // pred_check
                _
              $region110: #{gqa_forward.5} parent=85 // pred_check_branch
                %1096 = sbr.rel target = $region112
              $region111: #{gqa_forward.5} parent=85 // pred_region
                _
              $region112: #{gqa_forward.5} parent=85 // pred_fallthru
                _
            $region86: #{gqa_forward.5} parent=81 // pred_fallthru
              _
            // Predicated region
            $region87: #{gqa_forward.5} parent=81 // pred_check
              _
            $region88: #{gqa_forward.5} parent=81 // pred_check_branch
              %1066 = sbr.rel target = $region90
            $region89: #{gqa_forward.5} parent=81 // pred_region
              %s1068 = ssub.s32 256, 1
              loop: start=0, step=1, limit=1
              $region91: #{gqa_forward.5} parent=89 // loop_pre_header
                _
              $region92: #{gqa_forward.5} parent=89 // loop_header
                %s1070 = sphi 0, %s1074
                %p1071 = scmp.ge.s32.totalorder %s1070, 1
                %s1075 = sphi %s1051, %s1051
                %s1076 = sphi %s1060, %s1060
              $region93: #{gqa_forward.5} parent=89 // loop_header_branch
                %1073 = sbr.rel (%p1071) target = $region97
              $region94: #{gqa_forward.5} parent=89 // loop_body
                %v1077 = vld [vmem:[%s1075] sm:%s1068]
                %1078 = vst [vmem:[%s1076] sm:%s1068] %v1077
                %v1079 = vld [vmem:[%s1075 + $0x8] sm:%s1068]
                %1080 = vst [vmem:[%s1076 + $0x10] sm:%s1068] %v1079
              $region95: #{gqa_forward.5} parent=89 // loop_footer
                %s1074 = sadd.s32 1, %s1070
              $region96: #{gqa_forward.5} parent=89 // loop_footer_branch
                %1069 = sbr.rel target = $region92
              $region97: #{gqa_forward.5} parent=89 // loop_exit
                _
            $region90: #{gqa_forward.5} parent=81 // pred_fallthru
              _
          $region82: #{gqa_forward.5} parent=77 // pred_fallthru
            _
          %1097 = vnop
        $region78: #{gqa_forward.5} parent=61 // pred_fallthru
          _
      $region62: #{gqa_forward.5} parent=5 // pred_fallthru
        _
      %p1098 = scmp.le.s32.totalorder 2, %s8
      // Predicated region
      $region113: #{gqa_forward.5} parent=5 // pred_check
        %p1099 = pneg %p1098
      $region114: #{gqa_forward.5} parent=5 // pred_check_branch
        %1101 = sbr.rel (%p1099) target = $region116
      $region115: #{gqa_forward.5} parent=5 // pred_region
        %s1102 = ssub.s32 %s8, 2
        // Predicated region
        $region117: #{gqa_forward.5} parent=115 // pred_check
          %p1103 = pneg %p114
        $region118: #{gqa_forward.5} parent=115 // pred_check_branch
          %1105 = sbr.rel (%p1103) target = $region120
        $region119: #{gqa_forward.5} parent=115 // pred_region
          %s1106 = sand.u32 %s99, 1
          %s1107 = sand.u32 %s99, 1
          %s1108 = smul.addr %s1107, 16
          %s1109 = scalar_lea.vmem [#allocation4], %s1108
        $region120: #{gqa_forward.5} parent=115 // pred_fallthru
          _
      $region116: #{gqa_forward.5} parent=5 // pred_fallthru
        _
    $region6: #{gqa_forward.5} parent=1 // loop_footer
      %s12 = sadd.s32 1, %s8
    $region7: #{gqa_forward.5} parent=1 // loop_footer_branch
      %7 = sbr.rel target = $region3
    $region8: #{gqa_forward.5} parent=1 // loop_exit
      _

// kernel: gqa_forward.6
$region0: #{gqa_forward.6}
  #allocation0 [shape = 'u32[]', space=smem, size = 0x4, offset = 0x4, fixed_abs, tag = 'smem constant byte address 0x4 - core index']
  #allocation1 [shape = 'u32[72,128]{1,0:T(1,128)}', space=vmem, size = 0x9000, scoped, tag = 'internal scratch']
  #allocation2 [shape = 'f32[16,1]{1,0:T(8,128)}', space=vmem, size = 0x2000, scoped, tag = 'scratch operand']
  #allocation3 [shape = 'f32[16,1]{1,0:T(8,128)}', space=vmem, size = 0x2000, scoped, tag = 'scratch operand']
  #allocation4 [shape = 'f32[16,128]{1,0:T(8,128)}', space=vmem, size = 0x2000, scoped, tag = 'scratch operand']
  %s0 = inlined_call_operand.vmem [shape: bf16[2,2,16,128], index: 0, kind: input, shape index: {}]
  %s1 = inlined_call_operand.vmem [shape: bf16[2,8,512], index: 1, kind: input, shape index: {}]
  %s2 = inlined_call_operand.vmem [shape: f32[2,1,8], index: 2, kind: input, shape index: {}]
  %s3 = inlined_call_operand.vmem [shape: bf16[2,2,16,128], index: 3, kind: output, shape index: {}]
  %s4 = sld [smem:[#allocation0]]
  $region53: #{gqa_forward.6} parent=0
    _
  %s6 = ssub.s32 1, %s4
  %s7 = scalar_select 0, %s6, %s4
  loop: start=0, step=1, limit=6
  $region2: #{gqa_forward.6} parent=0 // loop_pre_header
    _
  $region3: #{gqa_forward.6} parent=0 // loop_header
    %s9 = sphi 0, %s13
    %p10 = scmp.ge.s32.totalorder %s9, 6
    %s16 = sphi 0, %s42
    %s17 = sphi 0, %s38
    %s18 = sphi 0, %s34
    %s19 = sphi 0, %s30
    %s20 = sphi 0, %s16
    %s21 = sphi 0, %s17
    %s22 = sphi 0, %s18
    %s23 = sphi 0, %s19
    %s24 = sphi 0, %s20
    %s25 = sphi 0, %s21
    %s26 = sphi 0, %s22
    %s27 = sphi 0, %s23
    %s49 = sphi 0, %s51
    %s52 = sphi 0, %s49
    %s53 = sphi 0, %s52
    %s69 = sphi 0, %s53
    %s79 = sphi 0, %s81
    %s82 = sphi 0, %s79
    %s83 = sphi 0, %s82
    %s99 = sphi 0, %s83
    %s107 = sphi 0, %s109
    %s110 = sphi 0, %s107
    %s111 = sphi 0, %s110
    %s127 = sphi 0, %s111
    %s137 = sphi 0, %s139
    %s140 = sphi 0, %s137
    %s141 = sphi 0, %s140
    %s157 = sphi 0, %s141
  $region4: #{gqa_forward.6} parent=0 // loop_header_branch
    %12 = sbr.rel (%p10) target = $region8
  $region5: #{gqa_forward.6} parent=0 // loop_body
    %s14 = ssub.s32 %s9, 1
    %s15 = ssub.s32 %s9, 2
    %s28 = sadd.s32 1, %s19
    %p29 = scmp.ge.s32.totalorder %s28, 1
    %s30 = scalar_select %p29, 0, %s28
    %s31 = sadd.s32 1, %s18
    %s32 = scalar_select %p29, %s31, %s18
    %p33 = scmp.ge.s32.totalorder %s32, 1
    %s34 = scalar_select %p33, 0, %s32
    %s35 = sadd.s32 1, %s17
    %s36 = scalar_select %p33, %s35, %s17
    %p37 = scmp.ge.s32.totalorder %s36, 2
    %s38 = scalar_select %p37, 0, %s36
    %s39 = sadd.s32 1, %s16
    %s40 = scalar_select %p37, %s39, %s16
    %p41 = scmp.ge.s32.totalorder %s40, 2
    %s42 = scalar_select %p41, 0, %s40
    %s43 = ssub.s32 %s16, %s42
    %s44 = ssub.s32 %s17, %s38
    %s45 = sor.u32 %s43, %s44
    %s46 = ssub.s32 %s18, %s34
    %s47 = sor.u32 %s45, %s46
    %p48 = scmp.eq.s32.totalorder %s47, 0
    %s50 = sadd.s32 %s49, 1
    %s51 = scalar_select %p48, %s49, %s50
    %p54 = pneg %p48
    %p55 = scmp.eq.s32.totalorder %s9, 3
    %p56 = por %p54, %p55
    %p57 = scmp.ne.s32.totalorder %s49, %s52
    %p58 = scmp.eq.s32.totalorder %s9, 0
    %p59 = por %p57, %p58
    %p60 = scmp.ne.s32.totalorder %s49, %s52
    %p61 = scmp.eq.s32.totalorder %s14, 3
    %p62 = por %p60, %p61
    %p63 = scmp.ne.s32.totalorder %s52, %s53
    %p64 = scmp.eq.s32.totalorder %s14, 0
    %p65 = por %p63, %p64
    %p66 = scmp.ne.s32.totalorder %s52, %s53
    %p67 = scmp.eq.s32.totalorder %s15, 3
    %p68 = por %p66, %p67
    %p70 = scmp.ne.s32.totalorder %s53, %s69
    %p71 = scmp.eq.s32.totalorder %s15, 0
    %p72 = por %p70, %p71
    %s73 = ssub.s32 %s16, %s42
    %s74 = ssub.s32 %s19, %s30
    %s75 = sor.u32 %s73, %s74
    %s76 = ssub.s32 %s17, %s38
    %s77 = sor.u32 %s75, %s76
    %p78 = scmp.eq.s32.totalorder %s77, 0
    %s80 = sadd.s32 %s79, 1
    %s81 = scalar_select %p78, %s79, %s80
    %p84 = pneg %p78
    %p85 = scmp.eq.s32.totalorder %s9, 3
    %p86 = por %p84, %p85
    %p87 = scmp.ne.s32.totalorder %s79, %s82
    %p88 = scmp.eq.s32.totalorder %s9, 0
    %p89 = por %p87, %p88
    %p90 = scmp.ne.s32.totalorder %s79, %s82
    %p91 = scmp.eq.s32.totalorder %s14, 3
    %p92 = por %p90, %p91
    %p93 = scmp.ne.s32.totalorder %s82, %s83
    %p94 = scmp.eq.s32.totalorder %s14, 0
    %p95 = por %p93, %p94
    %p96 = scmp.ne.s32.totalorder %s82, %s83
    %p97 = scmp.eq.s32.totalorder %s15, 3
    %p98 = por %p96, %p97
    %p100 = scmp.ne.s32.totalorder %s83, %s99
    %p101 = scmp.eq.s32.totalorder %s15, 0
    %p102 = por %p100, %p101
    %s103 = ssub.s32 %s16, %s42
    %s104 = ssub.s32 %s19, %s30
    %s105 = sor.u32 %s103, %s104
    %p106 = scmp.eq.s32.totalorder %s105, 0
    %s108 = sadd.s32 %s107, 1
    %s109 = scalar_select %p106, %s107, %s108
    %p112 = pneg %p106
    %p113 = scmp.eq.s32.totalorder %s9, 3
    %p114 = por %p112, %p113
    %p115 = scmp.ne.s32.totalorder %s107, %s110
    %p116 = scmp.eq.s32.totalorder %s9, 0
    %p117 = por %p115, %p116
    %p118 = scmp.ne.s32.totalorder %s107, %s110
    %p119 = scmp.eq.s32.totalorder %s14, 3
    %p120 = por %p118, %p119
    %p121 = scmp.ne.s32.totalorder %s110, %s111
    %p122 = scmp.eq.s32.totalorder %s14, 0
    %p123 = por %p121, %p122
    %p124 = scmp.ne.s32.totalorder %s110, %s111
    %p125 = scmp.eq.s32.totalorder %s15, 3
    %p126 = por %p124, %p125
    %p128 = scmp.ne.s32.totalorder %s111, %s127
    %p129 = scmp.eq.s32.totalorder %s15, 0
    %p130 = por %p128, %p129
    %s131 = ssub.s32 %s16, %s42
    %s132 = ssub.s32 %s17, %s38
    %s133 = sor.u32 %s131, %s132
    %s134 = ssub.s32 %s18, %s34
    %s135 = sor.u32 %s133, %s134
    %p136 = scmp.eq.s32.totalorder %s135, 0
    %s138 = sadd.s32 %s137, 1
    %s139 = scalar_select %p136, %s137, %s138
    %p142 = pneg %p136
    %p143 = scmp.eq.s32.totalorder %s9, 3
    %p144 = por %p142, %p143
    %p145 = scmp.ne.s32.totalorder %s137, %s140
    %p146 = scmp.eq.s32.totalorder %s9, 0
    %p147 = por %p145, %p146
    %p148 = scmp.ne.s32.totalorder %s137, %s140
    %p149 = scmp.eq.s32.totalorder %s14, 3
    %p150 = por %p148, %p149
    %p151 = scmp.ne.s32.totalorder %s140, %s141
    %p152 = scmp.eq.s32.totalorder %s14, 0
    %p153 = por %p151, %p152
    %p154 = scmp.ne.s32.totalorder %s140, %s141
    %p155 = scmp.eq.s32.totalorder %s15, 3
    %p156 = por %p154, %p155
    %p158 = scmp.ne.s32.totalorder %s141, %s157
    %p159 = scmp.eq.s32.totalorder %s15, 0
    %p160 = por %p158, %p159
    %p161 = scmp.le.s32.totalorder 1, %s9
    %p162 = scmp.lt.s32.totalorder %s9, 5
    %p163 = pnand %p161, %p162
    %p164 = pneg %p163
    // Predicated region
    $region9: #{gqa_forward.6} parent=5 // pred_check
      _
    $region10: #{gqa_forward.6} parent=5 // pred_check_branch
      %166 = sbr.rel (%p163) target = $region12
    $region11: #{gqa_forward.6} parent=5 // pred_region
      %s167 = ssub.s32 %s9, 1
    $region12: #{gqa_forward.6} parent=5 // pred_fallthru
      _
    %p168 = scmp.lt.s32.totalorder %s9, 4
    // Predicated region
    $region13: #{gqa_forward.6} parent=5 // pred_check
      %p169 = pneg %p168
    $region14: #{gqa_forward.6} parent=5 // pred_check_branch
      %171 = sbr.rel (%p169) target = $region16
    $region15: #{gqa_forward.6} parent=5 // pred_region
      // Predicated region
      $region17: #{gqa_forward.6} parent=15 // pred_check
        %p172 = pneg %p59
      $region18: #{gqa_forward.6} parent=15 // pred_check_branch
        %174 = sbr.rel (%p172) target = $region20
      $region19: #{gqa_forward.6} parent=15 // pred_region
        %s175 = smul.u32 2, %s18
        %p176 = scmp.lt.s32.totalorder %s16, 1
        %s177 = scalar_select %p176, %s16, 1
        %p178 = scmp.lt.s32.totalorder %s17, 1
        %s179 = scalar_select %p178, %s17, 1
        %p180 = scmp.lt.s32.totalorder %s175, 1
        %s181 = scalar_select %p180, %s175, 1
        %s182 = smul.addr %s179, 2
        %s183 = sadd.s32 %s181, %s182
        %s184 = smul.addr %s177, 4
        %s185 = sadd.s32 %s183, %s184
        %s186 = smul.addr %s185, 4
        %s187 = scalar_lea.vmem %s0, %s186
        %s188 = smul.u32 2, %s18
      $region20: #{gqa_forward.6} parent=15 // pred_fallthru
        _
      // Predicated region
      $region21: #{gqa_forward.6} parent=15 // pred_check
        %p189 = pneg %p89
      $region22: #{gqa_forward.6} parent=15 // pred_check_branch
        %191 = sbr.rel (%p189) target = $region24
      $region23: #{gqa_forward.6} parent=15 // pred_region
        %s192 = smul.u32 2, %s17
        %p193 = scmp.lt.s32.totalorder %s16, 1
        %s194 = scalar_select %p193, %s16, 1
        %p195 = scmp.lt.s32.totalorder %s19, 0
        %s196 = scalar_select %p195, %s19, 0
        %p197 = scmp.lt.s32.totalorder %s192, 3
        %s198 = scalar_select %p197, %s192, 3
        %s199 = smul.addr %s196, 4
        %s200 = sadd.s32 %s198, %s199
        %s201 = smul.addr %s194, 4
        %s202 = sadd.s32 %s200, %s201
        %s203 = smul.addr %s202, 4
        %s204 = scalar_lea.vmem %s1, %s203
        %s205 = smul.u32 2, %s17
      $region24: #{gqa_forward.6} parent=15 // pred_fallthru
        _
      // Predicated region
      $region25: #{gqa_forward.6} parent=15 // pred_check
        %p206 = pneg %p117
      $region26: #{gqa_forward.6} parent=15 // pred_check_branch
        %208 = sbr.rel (%p206) target = $region28
      $region27: #{gqa_forward.6} parent=15 // pred_region
        %p209 = scmp.lt.s32.totalorder %s16, 1
        %s210 = scalar_select %p209, %s16, 1
        %p211 = scmp.lt.s32.totalorder %s19, 0
        %s212 = scalar_select %p211, %s19, 0
        %s213 = sadd.s32 %s212, %s210
        %s214 = scalar_lea.vmem %s2, %s213
      $region28: #{gqa_forward.6} parent=15 // pred_fallthru
        _
    $region16: #{gqa_forward.6} parent=5 // pred_fallthru
      _
    %p215 = scmp.le.s32.totalorder 1, %s9
    %p216 = scmp.lt.s32.totalorder %s9, 5
    %p217 = pnand %p215, %p216
    %p218 = pneg %p217
    // Predicated region
    $region29: #{gqa_forward.6} parent=5 // pred_check
      _
    $region30: #{gqa_forward.6} parent=5 // pred_check_branch
      %220 = sbr.rel (%p217) target = $region32
    $region31: #{gqa_forward.6} parent=5 // pred_region
      %s221 = ssub.s32 %s9, 1
      %s222 = smul.u32 2, %s22
      %p223 = scmp.lt.s32.totalorder %s20, 1
      %s224 = scalar_select %p223, %s20, 1
      %p225 = scmp.lt.s32.totalorder %s21, 1
      %s226 = scalar_select %p225, %s21, 1
      %p227 = scmp.lt.s32.totalorder %s222, 1
      %s228 = scalar_select %p227, %s222, 1
      %s229 = smul.addr %s226, 2
      %s230 = sadd.s32 %s228, %s229
      %s231 = smul.addr %s224, 4
      %s232 = sadd.s32 %s230, %s231
      %s233 = smul.addr %s232, 4
      %s234 = scalar_lea.vmem %s0, %s233
      %p235 = pneg %p65
      %p236 = pneg %p62
      %s237 = smul.u32 2, %s21
      %p238 = scmp.lt.s32.totalorder %s20, 1
      %s239 = scalar_select %p238, %s20, 1
      %p240 = scmp.lt.s32.totalorder %s23, 0
      %s241 = scalar_select %p240, %s23, 0
      %p242 = scmp.lt.s32.totalorder %s237, 3
      %s243 = scalar_select %p242, %s237, 3
      %s244 = smul.addr %s241, 4
      %s245 = sadd.s32 %s243, %s244
      %s246 = smul.addr %s239, 4
      %s247 = sadd.s32 %s245, %s246
      %s248 = smul.addr %s247, 4
      %s249 = scalar_lea.vmem %s1, %s248
      %p250 = pneg %p95
      %p251 = pneg %p92
      %p252 = scmp.lt.s32.totalorder %s20, 1
      %s253 = scalar_select %p252, %s20, 1
      %p254 = scmp.lt.s32.totalorder %s23, 0
      %s255 = scalar_select %p254, %s23, 0
      %s256 = sadd.s32 %s255, %s253
      %s257 = scalar_lea.vmem %s2, %s256
      %p258 = pneg %p123
      %p259 = pneg %p120
      %p260 = pneg %p153
      %p261 = pneg %p150
      %s262 = smul.u32 2, %s22
      %p263 = scmp.lt.s32.totalorder %s20, 1
      %s264 = scalar_select %p263, %s20, 1
      %p265 = scmp.lt.s32.totalorder %s21, 1
      %s266 = scalar_select %p265, %s21, 1
      %p267 = scmp.lt.s32.totalorder %s262, 1
      %s268 = scalar_select %p267, %s262, 1
      %s269 = smul.addr %s266, 2
      %s270 = sadd.s32 %s268, %s269
      %s271 = smul.addr %s264, 4
      %s272 = sadd.s32 %s270, %s271
      %s273 = smul.addr %s272, 4
      %s274 = scalar_lea.vmem %s3, %s273
      %s275 = smul.u32 2, %s22
      %p276 = scmp.lt.s32.totalorder %s20, 1
      %s277 = scalar_select %p276, %s20, 1
      %p278 = scmp.lt.s32.totalorder %s21, 1
      %s279 = scalar_select %p278, %s21, 1
      %p280 = scmp.lt.s32.totalorder %s275, 1
      %s281 = scalar_select %p280, %s275, 1
      %s282 = smul.addr %s279, 2
      %s283 = sadd.s32 %s281, %s282
      %s284 = smul.addr %s277, 4
      %s285 = sadd.s32 %s283, %s284
      %s286 = smul.addr %s285, 4
      %s287 = scalar_lea.vmem %s0, %s286
      %s288 = smul.u32 2, %s22
      %s289 = smul.u32 2, %s21
      %p290 = scmp.lt.s32.totalorder %s20, 1
      %s291 = scalar_select %p290, %s20, 1
      %p292 = scmp.lt.s32.totalorder %s23, 0
      %s293 = scalar_select %p292, %s23, 0
      %p294 = scmp.lt.s32.totalorder %s289, 3
      %s295 = scalar_select %p294, %s289, 3
      %s296 = smul.addr %s293, 4
      %s297 = sadd.s32 %s295, %s296
      %s298 = smul.addr %s291, 4
      %s299 = sadd.s32 %s297, %s298
      %s300 = smul.addr %s299, 4
      %s301 = scalar_lea.vmem %s1, %s300
      %s302 = smul.u32 2, %s21
      %p303 = scmp.lt.s32.totalorder %s20, 1
      %s304 = scalar_select %p303, %s20, 1
      %p305 = scmp.lt.s32.totalorder %s23, 0
      %s306 = scalar_select %p305, %s23, 0
      %s307 = sadd.s32 %s306, %s304
      %s308 = scalar_lea.vmem %s2, %s307
      %s309 = smul.u32 2, %s22
      %p310 = scmp.lt.s32.totalorder %s20, 1
      %s311 = scalar_select %p310, %s20, 1
      %p312 = scmp.lt.s32.totalorder %s21, 1
      %s313 = scalar_select %p312, %s21, 1
      %p314 = scmp.lt.s32.totalorder %s309, 1
      %s315 = scalar_select %p314, %s309, 1
      %s316 = smul.addr %s313, 2
      %s317 = sadd.s32 %s315, %s316
      %s318 = smul.addr %s311, 4
      %s319 = sadd.s32 %s317, %s318
      %s320 = smul.addr %s319, 4
      %s321 = scalar_lea.vmem %s3, %s320
      %s322 = smul.u32 2, %s22
      %p324 = scmp.eq.s32.totalorder %s23, 0
      // Predicated region
      $region33: #{gqa_forward.6} parent=31 // pred_check
        %p325 = pneg %p324
      $region34: #{gqa_forward.6} parent=31 // pred_check_branch
        %327 = sbr.rel (%p325) target = $region36
      $region35: #{gqa_forward.6} parent=31 // pred_region
        %vm328 = vcmask 7168
        %329 = vst.msk [vmem:[#allocation2] sm:$0xff] %vm328, -inf
        %330 = vst.msk [vmem:[#allocation2 + $0x8] sm:$0xff] %vm328, -inf
        %331 = vst.msk [vmem:[#allocation3] sm:$0xff] %vm328, 0.0
        %332 = vst.msk [vmem:[#allocation3 + $0x8] sm:$0xff] %vm328, 0.0
        %333 = vst [vmem:[#allocation4] sm:$0xff] 0.0
        %334 = vst [vmem:[#allocation4 + $0x8] sm:$0xff] 0.0
      $region36: #{gqa_forward.6} parent=31 // pred_fallthru
        _
      %v335 = vld [vmem:[%s287] sm:$0xf]
      %v336 = vld [vmem:[%s287 + $0x4] sm:$0xf]
      %v337 = vld [vmem:[%s301] sm:$0xf]
      %v338 = vld [vmem:[%s301 + $0x4] sm:$0xf]
      %v339 = vld [vmem:[%s308] sm:$0x1]
      %v341 = vperm.slane %v339, 0
      %v345 = vunpack.c.l.b16 %v335
      %v346 = vunpack.c.l.b16 %v336
      %v347 = vpack.c.b16 %v346, %v345
      %349 = vmatpush.bf16.xpose.msra.mxu0 0
      %350 = vmatpush.bf16.xpose.msra.mxu0 0
      %351 = vmatpush.bf16.xpose.msra.mxu0 0
      %352 = vmatpush.bf16.xpose.msra.mxu0 0
      %353 = vmatpush.bf16.xpose.msra.mxu0 0
      %354 = vmatpush.bf16.xpose.msra.mxu0 0
      %355 = vmatpush.bf16.xpose.msra.mxu0 0
      %356 = vmatpush.bf16.xpose.msra.mxu0 %v337
      %357 = vmatmul.bf16.gmra.mxu0 %v347
      %v358 = vpop.f32.mrf.mxu0
      %v359 = vadd.f32 %v341, %v358
      %v360 = vpop.f32.mrf.mxu0
      %v361 = vadd.f32 %v341, %v360
      %362 = vdwg.mxu0
      %v363 = vld [vmem:[#allocation2] sm:$0xff]
      %v364 = vld [vmem:[#allocation2 + $0x8] sm:$0xff]
      %vm365 = vcmask 64512
      %v366 = vsel %vm365, %v359, -inf
      %367 = vmax.xlane.f32.xlu0 %v366
      %v368 = vpop.xlane.xlu0 %367
      %v369 = vsel %vm365, %v361, -inf
      %370 = vmax.xlane.f32.xlu0 %v369
      %v371 = vpop.xlane.xlu0 %370
      %v372 = vmax.f32 %v363, %v368
      %v373 = vmax.f32 %v364, %v371
      %v374 = vsub.f32 %v363, %v372
      %v375 = vsub.f32 %v364, %v373
      %v376 = vmul.f32 %v374, 1.442695
      %v377 = vpow.pop %v376
      %v378 = vmul.f32 %v375, 1.442695
      %v379 = vpow.pop %v378
      %381 = vset.pattern.permute.xlu0 0
      %382 = vperm.xlu0 %381, %v372
      %v383 = vpop.permute.xlu0 %382
      %386 = vset.pattern.permute.xlu0 0
      %387 = vperm.xlu0 %386, %v373
      %v388 = vpop.permute.xlu0 %387
      %v390 = vsub.f32 %v359, %v383
      %v391 = vsub.f32 %v361, %v388
      %v392 = vmul.f32 %v390, 1.442695
      %v393 = vpow.pop %v392
      %v394 = vmul.f32 %v391, 1.442695
      %v395 = vpow.pop %v394
      %v396 = vld [vmem:[#allocation3] sm:$0xff]
      %v397 = vld [vmem:[#allocation3 + $0x8] sm:$0xff]
      %v398 = vmul.f32 %v377, %v396
      %v399 = vmul.f32 %v379, %v397
      %v400 = vsel %vm365, %v393, 0.0
      %401 = vadd.xlane.f32.xlu0 %v400
      %v402 = vpop.xlane.xlu0 %401
      %v403 = vsel %vm365, %v395, 0.0
      %404 = vadd.xlane.f32.xlu0 %v403
      %v405 = vpop.xlane.xlu0 %404
      %v406 = vadd.f32 %v398, %v402
      %v407 = vadd.f32 %v399, %v405
      %vm408 = vcmask 7168
      %409 = vst.msk [vmem:[#allocation3] sm:$0xff] %vm408, %v406
      %410 = vst.msk [vmem:[#allocation3 + $0x8] sm:$0xff] %vm408, %v407
      %v411 = vld [vmem:[#allocation4] sm:$0xff]
      %v412 = vld [vmem:[#allocation4 + $0x8] sm:$0xff]
      %414 = vset.pattern.permute.xlu0 0
      %415 = vperm.xlu0 %414, %v377
      %v416 = vpop.permute.xlu0 %415
      %419 = vset.pattern.permute.xlu0 0
      %420 = vperm.xlu0 %419, %v379
      %v421 = vpop.permute.xlu0 %420
      %v423 = vmul.f32 %v416, %v411
      %v424 = vmul.f32 %v421, %v412
      %v425 = vpack.c.bf16 %v395, %v393
      %v427 = vsel %vm365, %v425, 0
      %vm429 = vcmask 1043456
      %v431 = vsel %vm429, %v338, 0
      %433 = vmatpush.bf16.msra.mxu0 0
      %434 = vmatpush.bf16.msra.mxu0 0
      %435 = vmatpush.bf16.msra.mxu0 0
      %436 = vmatpush.bf16.msra.mxu0 0
      %437 = vmatpush.bf16.msra.mxu0 0
      %438 = vmatpush.bf16.msra.mxu0 0
      %439 = vmatpush.bf16.msra.mxu0 0
      %440 = vmatpush.bf16.msra.mxu0 %v431
      %441 = vmatmul.bf16.gmra.mxu0 %v427
      %v442 = vpop.f32.mrf.mxu0
      %v443 = vadd.f32 0.0, %v442
      %v444 = vpop.f32.mrf.mxu0
      %v445 = vadd.f32 0.0, %v444
      %446 = vdwg.mxu0
      %v447 = vadd.f32 %v423, %v443
      %v448 = vadd.f32 %v424, %v445
      %449 = vst [vmem:[#allocation4] sm:$0xff] %v447
      %450 = vst [vmem:[#allocation4 + $0x8] sm:$0xff] %v448
      %451 = vst.msk [vmem:[#allocation2] sm:$0xff] %vm408, %v372
      %452 = vst.msk [vmem:[#allocation2 + $0x8] sm:$0xff] %vm408, %v373
      // Predicated region
      $region37: #{gqa_forward.6} parent=31 // pred_check
        %p453 = pneg %p324
      $region38: #{gqa_forward.6} parent=31 // pred_check_branch
        %455 = sbr.rel (%p453) target = $region40
      $region39: #{gqa_forward.6} parent=31 // pred_region
        %v456 = vld [vmem:[#allocation4] sm:$0xff]
        %v457 = vld [vmem:[#allocation4 + $0x8] sm:$0xff]
        %v458 = vld [vmem:[#allocation3] sm:$0xff]
        %v459 = vld [vmem:[#allocation3 + $0x8] sm:$0xff]
        %461 = vset.pattern.permute.xlu0 0
        %462 = vperm.xlu0 %461, %v458
        %v463 = vpop.permute.xlu0 %462
        %466 = vset.pattern.permute.xlu0 0
        %467 = vperm.xlu0 %466, %v459
        %v468 = vpop.permute.xlu0 %467
        %v470 = vrcp.pop %v463
        %v471 = vmul.f32 %v463, %v470
        %v472 = vsub.f32 1.0, %v471
        %v473 = vmul.f32 %v470, %v472
        %v474 = vadd.f32 %v470, %v473
        %vm475 = vweird.f32 %v463
        %vm476 = vweird.f32 %v470
        %vm477 = vmor %vm475, %vm476
        %v478 = vsel %vm477, %v470, %v474
        %v479 = vand.u32 2147483647, %v463
        %vm480 = vcmp.eq.f32.partialorder %v479, 8.507059e+37
        %v481 = vand.u32 %v463, 2147483648
        %v482 = vor.u32 1.1754944e-38, %v481
        %v483 = vsel %vm480, %v482, %v478
        %v484 = vmul.f32 %v456, %v483
        %v485 = vrcp.pop %v468
        %v486 = vmul.f32 %v468, %v485
        %v487 = vsub.f32 1.0, %v486
        %v488 = vmul.f32 %v485, %v487
        %v489 = vadd.f32 %v485, %v488
        %vm490 = vweird.f32 %v468
        %vm491 = vweird.f32 %v485
        %vm492 = vmor %vm490, %vm491
        %v493 = vsel %vm492, %v485, %v489
        %v494 = vand.u32 2147483647, %v468
        %vm495 = vcmp.eq.f32.partialorder %v494, 8.507059e+37
        %v496 = vand.u32 %v468, 2147483648
        %v497 = vor.u32 1.1754944e-38, %v496
        %v498 = vsel %vm495, %v497, %v493
        %v499 = vmul.f32 %v457, %v498
        %v500 = vpack.c.bf16 %v484, %v484
        %v501 = vpack.c.bf16 %v499, %v499
        %502 = vst [vmem:[%s321] sm:$0xf] %v500
        %503 = vst [vmem:[%s321 + $0x4] sm:$0xf] %v501
      $region40: #{gqa_forward.6} parent=31 // pred_fallthru
        _
      %s504 = smul.u32 2, %s22
      %p505 = scmp.lt.s32.totalorder %s20, 1
      %s506 = scalar_select %p505, %s20, 1
      %p507 = scmp.lt.s32.totalorder %s21, 1
      %s508 = scalar_select %p507, %s21, 1
      %p509 = scmp.lt.s32.totalorder %s504, 1
      %s510 = scalar_select %p509, %s504, 1
      %s511 = smul.addr %s508, 2
      %s512 = sadd.s32 %s510, %s511
      %s513 = smul.addr %s506, 4
      %s514 = sadd.s32 %s512, %s513
      %s515 = smul.addr %s514, 4
      %s516 = scalar_lea.vmem %s3, %s515
      // Predicated region
      $region41: #{gqa_forward.6} parent=31 // pred_check
        %p517 = pneg %p150
      $region42: #{gqa_forward.6} parent=31 // pred_check_branch
        %519 = sbr.rel (%p517) target = $region44
      $region43: #{gqa_forward.6} parent=31 // pred_region
        %s520 = smul.u32 2, %s22
      $region44: #{gqa_forward.6} parent=31 // pred_fallthru
        _
    $region32: #{gqa_forward.6} parent=5 // pred_fallthru
      _
    %p521 = scmp.le.s32.totalorder 2, %s9
    // Predicated region
    $region45: #{gqa_forward.6} parent=5 // pred_check
      %p522 = pneg %p521
    $region46: #{gqa_forward.6} parent=5 // pred_check_branch
      %524 = sbr.rel (%p522) target = $region48
    $region47: #{gqa_forward.6} parent=5 // pred_region
      %s525 = ssub.s32 %s9, 2
      // Predicated region
      $region49: #{gqa_forward.6} parent=47 // pred_check
        %p526 = pneg %p156
      $region50: #{gqa_forward.6} parent=47 // pred_check_branch
        %528 = sbr.rel (%p526) target = $region52
      $region51: #{gqa_forward.6} parent=47 // pred_region
        %s529 = smul.u32 2, %s26
        %p530 = scmp.lt.s32.totalorder %s24, 1
        %s531 = scalar_select %p530, %s24, 1
        %p532 = scmp.lt.s32.totalorder %s25, 1
        %s533 = scalar_select %p532, %s25, 1
        %p534 = scmp.lt.s32.totalorder %s529, 1
        %s535 = scalar_select %p534, %s529, 1
        %s536 = smul.addr %s533, 2
        %s537 = sadd.s32 %s535, %s536
        %s538 = smul.addr %s531, 4
        %s539 = sadd.s32 %s537, %s538
        %s540 = smul.addr %s539, 4
        %s541 = scalar_lea.vmem %s3, %s540
      $region52: #{gqa_forward.6} parent=47 // pred_fallthru
        _
    $region48: #{gqa_forward.6} parent=5 // pred_fallthru
      _
  $region6: #{gqa_forward.6} parent=0 // loop_footer
    %s13 = sadd.s32 1, %s9
  $region7: #{gqa_forward.6} parent=0 // loop_footer_branch
    %8 = sbr.rel target = $region3
  $region8: #{gqa_forward.6} parent=0 // loop_exit
    _

// kernel: gqa_forward.4
$region0: #{gqa_forward.4}
  #allocation0 [shape = 'u32[]', space=smem, size = 0x4, offset = 0x4, fixed_abs, tag = 'smem constant byte address 0x4 - core index']
  #allocation1 [shape = 'u32[72,128]{1,0:T(1,128)}', space=vmem, size = 0x9000, scoped, tag = 'internal scratch']
  #allocation2 [shape = 'f32[16,256]{1,0:T(8,128)}', space=vmem, size = 0x4000, scoped, tag = 'scratch operand']
  %s0 = inlined_call_operand.vmem [shape: bf16[16,512], index: 0, kind: input, shape index: {}]
  %s1 = inlined_call_operand.hbm [shape: bf16[512,512], index: 1, kind: input, shape index: {}]
  %s2 = inlined_call_operand.vmem [shape: bf16[16,512], index: 2, kind: output, shape index: {}]
  %s3 = sld [smem:[#allocation0]]
  $region87: #{gqa_forward.4} parent=0
    _
  %s5 = ssub.s32 1, %s3
  %s6 = scalar_select 0, %s5, %s3
  $region1: #{gqa_forward.4} parent=0
    #allocation3 [shape = 'u8[524288]{0}', space=vmem, size = 0x80000, scoped, tag = 'input window, operand 1']
    #allocation4 [shape = 's32[2]{0}', space=sflag, size = 0x8, scoped, tag = 'scoped memory for gqa_forward.4']
    #allocation5 [shape = 'u8[16384]{0}', space=vmem, size = 0x4000, scoped, tag = 'output window, operand 0']
    %7 = vsyncpa [#allocation4], 0
    %s8 = scalar_lea.sflag [#allocation4], 1
    %9 = vsyncpa %s8, 0
    loop: start=0, step=1, limit=4
    $region2: #{gqa_forward.4} parent=1 // loop_pre_header
      _
    $region3: #{gqa_forward.4} parent=1 // loop_header
      %s11 = sphi 0, %s15
      %p12 = scmp.ge.s32.totalorder %s11, 4
      %s18 = sphi 0, %s37
      %s19 = sphi 0, %s33
      %s20 = sphi 0, %s29
      %s21 = sphi 0, %s18
      %s22 = sphi 0, %s19
      %s23 = sphi 0, %s20
      %s24 = sphi 0, %s21
      %s25 = sphi 0, %s22
      %s26 = sphi 0, %s23
      %s42 = sphi 0, %s44
      %s45 = sphi 0, %s42
      %s46 = sphi 0, %s45
      %s62 = sphi 0, %s46
      %s70 = sphi 0, %s72
      %s73 = sphi 0, %s70
      %s74 = sphi 0, %s73
      %s90 = sphi 0, %s74
      %s98 = sphi 0, %s100
      %s101 = sphi 0, %s98
      %s102 = sphi 0, %s101
      %s118 = sphi 0, %s102
    $region4: #{gqa_forward.4} parent=1 // loop_header_branch
      %14 = sbr.rel (%p12) target = $region8
    $region5: #{gqa_forward.4} parent=1 // loop_body
      %s16 = ssub.s32 %s11, 1
      %s17 = ssub.s32 %s11, 2
      %s27 = sadd.s32 1, %s20
      %p28 = scmp.ge.s32.totalorder %s27, 1
      %s29 = scalar_select %p28, 0, %s27
      %s30 = sadd.s32 1, %s19
      %s31 = scalar_select %p28, %s30, %s19
      %p32 = scmp.ge.s32.totalorder %s31, 2
      %s33 = scalar_select %p32, 0, %s31
      %s34 = sadd.s32 1, %s18
      %s35 = scalar_select %p32, %s34, %s18
      %p36 = scmp.ge.s32.totalorder %s35, 1
      %s37 = scalar_select %p36, 0, %s35
      %s38 = ssub.s32 %s18, %s37
      %s39 = ssub.s32 %s20, %s29
      %s40 = sor.u32 %s38, %s39
      %p41 = scmp.eq.s32.totalorder %s40, 0
      %s43 = sadd.s32 %s42, 1
      %s44 = scalar_select %p41, %s42, %s43
      %p47 = pneg %p41
      %p48 = scmp.eq.s32.totalorder %s11, 1
      %p49 = por %p47, %p48
      %p50 = scmp.ne.s32.totalorder %s42, %s45
      %p51 = scmp.eq.s32.totalorder %s11, 0
      %p52 = por %p50, %p51
      %p53 = scmp.ne.s32.totalorder %s42, %s45
      %p54 = scmp.eq.s32.totalorder %s16, 1
      %p55 = por %p53, %p54
      %p56 = scmp.ne.s32.totalorder %s45, %s46
      %p57 = scmp.eq.s32.totalorder %s16, 0
      %p58 = por %p56, %p57
      %p59 = scmp.ne.s32.totalorder %s45, %s46
      %p60 = scmp.eq.s32.totalorder %s17, 1
      %p61 = por %p59, %p60
      %p63 = scmp.ne.s32.totalorder %s46, %s62
      %p64 = scmp.eq.s32.totalorder %s17, 0
      %p65 = por %p63, %p64
      %s66 = ssub.s32 %s20, %s29
      %s67 = ssub.s32 %s19, %s33
      %s68 = sor.u32 %s66, %s67
      %p69 = scmp.eq.s32.totalorder %s68, 0
      %s71 = sadd.s32 %s70, 1
      %s72 = scalar_select %p69, %s70, %s71
      %p75 = pneg %p69
      %p76 = scmp.eq.s32.totalorder %s11, 1
      %p77 = por %p75, %p76
      %p78 = scmp.ne.s32.totalorder %s70, %s73
      %p79 = scmp.eq.s32.totalorder %s11, 0
      %p80 = por %p78, %p79
      %p81 = scmp.ne.s32.totalorder %s70, %s73
      %p82 = scmp.eq.s32.totalorder %s16, 1
      %p83 = por %p81, %p82
      %p84 = scmp.ne.s32.totalorder %s73, %s74
      %p85 = scmp.eq.s32.totalorder %s16, 0
      %p86 = por %p84, %p85
      %p87 = scmp.ne.s32.totalorder %s73, %s74
      %p88 = scmp.eq.s32.totalorder %s17, 1
      %p89 = por %p87, %p88
      %p91 = scmp.ne.s32.totalorder %s74, %s90
      %p92 = scmp.eq.s32.totalorder %s17, 0
      %p93 = por %p91, %p92
      %s94 = ssub.s32 %s18, %s37
      %s95 = ssub.s32 %s19, %s33
      %s96 = sor.u32 %s94, %s95
      %p97 = scmp.eq.s32.totalorder %s96, 0
      %s99 = sadd.s32 %s98, 1
      %s100 = scalar_select %p97, %s98, %s99
      %p103 = pneg %p97
      %p104 = scmp.eq.s32.totalorder %s11, 1
      %p105 = por %p103, %p104
      %p106 = scmp.ne.s32.totalorder %s98, %s101
      %p107 = scmp.eq.s32.totalorder %s11, 0
      %p108 = por %p106, %p107
      %p109 = scmp.ne.s32.totalorder %s98, %s101
      %p110 = scmp.eq.s32.totalorder %s16, 1
      %p111 = por %p109, %p110
      %p112 = scmp.ne.s32.totalorder %s101, %s102
      %p113 = scmp.eq.s32.totalorder %s16, 0
      %p114 = por %p112, %p113
      %p115 = scmp.ne.s32.totalorder %s101, %s102
      %p116 = scmp.eq.s32.totalorder %s17, 1
      %p117 = por %p115, %p116
      %p119 = scmp.ne.s32.totalorder %s102, %s118
      %p120 = scmp.eq.s32.totalorder %s17, 0
      %p121 = por %p119, %p120
      %p122 = scmp.le.s32.totalorder 1, %s11
      %p123 = scmp.lt.s32.totalorder %s11, 3
      %p124 = pnand %p122, %p123
      %p125 = pneg %p124
      // Predicated region
      $region9: #{gqa_forward.4} parent=5 // pred_check
        _
      $region10: #{gqa_forward.4} parent=5 // pred_check_branch
        %127 = sbr.rel (%p124) target = $region12
      $region11: #{gqa_forward.4} parent=5 // pred_region
        %s128 = ssub.s32 %s11, 1
        // Predicated region
        $region13: #{gqa_forward.4} parent=11 // pred_check
          %p129 = pneg %p58
        $region14: #{gqa_forward.4} parent=11 // pred_check_branch
          %131 = sbr.rel (%p129) target = $region16
        $region15: #{gqa_forward.4} parent=11 // pred_region
          %s132 = smul.u32 2, %s21
          %s133 = smul.u32 4, %s23
          %p134 = scmp.lt.s32.totalorder %s132, 1
          %s135 = scalar_select %p134, %s132, 1
          %p136 = scmp.lt.s32.totalorder %s133, 3
          %s137 = scalar_select %p136, %s133, 3
          %s138 = smul.addr %s135, 4
          %s139 = sadd.s32 %s137, %s138
          %s140 = smul.addr %s139, 4
          %s141 = scalar_lea.vmem %s0, %s140
          %s142 = smul.u32 2, %s21
          %s143 = smul.u32 4, %s23
        $region16: #{gqa_forward.4} parent=11 // pred_fallthru
          _
      $region12: #{gqa_forward.4} parent=5 // pred_fallthru
        _
      %p144 = scmp.lt.s32.totalorder %s11, 2
      // Predicated region
      $region17: #{gqa_forward.4} parent=5 // pred_check
        %p145 = pneg %p144
      $region18: #{gqa_forward.4} parent=5 // pred_check_branch
        %147 = sbr.rel (%p145) target = $region20
      $region19: #{gqa_forward.4} parent=5 // pred_region
        // Predicated region
        $region21: #{gqa_forward.4} parent=19 // pred_check
          %p148 = pneg %p80
        $region22: #{gqa_forward.4} parent=19 // pred_check_branch
          %150 = sbr.rel (%p148) target = $region24
        $region23: #{gqa_forward.4} parent=19 // pred_region
          %s151 = sand.u32 %s70, 1
          %s152 = scalar_lea.sflag [#allocation4], %s151
          %s153 = sand.u32 %s70, 1
          %s154 = smul.addr %s153, 512
          %s155 = scalar_lea.vmem [#allocation3], %s154
          %s156 = smul.u32 64, %s20
          %s157 = smul.u32 2, %s19
          %159 = vsyncadd %s152, 0
          %s160 = smul.addr %s156, 4
          %s161 = sadd.s32 %s157, %s160
          %s162 = smul.addr %s161, 4
          %s163 = scalar_lea.hbm %s1, %s162
          %s164 = sshll.u32 %s163, 4
          %s165 = int_to_ptr.hbm [resolvable:$true] %s164
          %s166 = sshll.u32 %s155, 4
          %s167 = int_to_ptr.vmem [resolvable:$true] %s166
          %172 = dma.hbm_to_vmem [thread:$0]  %s165, 8192, %s167, %s152, 256, 128, 8
        $region24: #{gqa_forward.4} parent=19 // pred_fallthru
          _
      $region20: #{gqa_forward.4} parent=5 // pred_fallthru
        _
      %p173 = scmp.le.s32.totalorder 1, %s11
      %p174 = scmp.lt.s32.totalorder %s11, 3
      %p175 = pnand %p173, %p174
      %p176 = pneg %p175
      // Predicated region
      $region25: #{gqa_forward.4} parent=5 // pred_check
        _
      $region26: #{gqa_forward.4} parent=5 // pred_check_branch
        %178 = sbr.rel (%p175) target = $region28
      $region27: #{gqa_forward.4} parent=5 // pred_region
        %s179 = ssub.s32 %s11, 1
        %s180 = sand.u32 %s73, 1
        %s181 = scalar_lea.sflag [#allocation4], %s180
        %s182 = sand.u32 %s73, 1
        %s183 = smul.addr %s182, 512
        %s184 = scalar_lea.vmem [#allocation3], %s183
        // Predicated region
        $region29: #{gqa_forward.4} parent=27 // pred_check
          %p185 = pneg %p86
        $region30: #{gqa_forward.4} parent=27 // pred_check_branch
          %187 = sbr.rel (%p185) target = $region32
        $region31: #{gqa_forward.4} parent=27 // pred_region
          %189 = dma.done %s181, 8192
        $region32: #{gqa_forward.4} parent=27 // pred_fallthru
          _
        %s190 = smul.u32 2, %s21
        %s191 = smul.u32 4, %s23
        %p192 = scmp.lt.s32.totalorder %s190, 1
        %s193 = scalar_select %p192, %s190, 1
        %p194 = scmp.lt.s32.totalorder %s191, 3
        %s195 = scalar_select %p194, %s191, 3
        %s196 = smul.addr %s193, 4
        %s197 = sadd.s32 %s195, %s196
        %s198 = smul.addr %s197, 4
        %s199 = scalar_lea.vmem %s0, %s198
        %p200 = pneg %p58
        %p201 = pneg %p55
        %s202 = sand.u32 %s73, 1
        %s203 = scalar_lea.sflag [#allocation4], %s202
        %s204 = sand.u32 %s73, 1
        %s205 = smul.addr %s204, 512
        %s206 = scalar_lea.vmem [#allocation3], %s205
        %p207 = pneg %p86
        %p208 = pneg %p83
        %p209 = pneg %p114
        %p210 = pneg %p111
        %s211 = sand.u32 %s101, 1
        %s212 = sand.u32 %s101, 1
        %s213 = smul.addr %s212, 16
        %s214 = scalar_lea.vmem [#allocation5], %s213
        %s215 = smul.u32 2, %s21
        %s216 = smul.u32 4, %s23
        %p217 = scmp.lt.s32.totalorder %s215, 1
        %s218 = scalar_select %p217, %s215, 1
        %p219 = scmp.lt.s32.totalorder %s216, 3
        %s220 = scalar_select %p219, %s216, 3
        %s221 = smul.addr %s218, 4
        %s222 = sadd.s32 %s220, %s221
        %s223 = smul.addr %s222, 4
        %s224 = scalar_lea.vmem %s0, %s223
        %s225 = smul.u32 2, %s21
        %s226 = smul.u32 4, %s23
        %s227 = smul.u32 64, %s23
        %s228 = smul.u32 2, %s22
        %s229 = smul.u32 2, %s21
        %s230 = smul.u32 2, %s22
        %p231 = scmp.eq.s32.totalorder %s23, 0
        // Predicated region
        $region33: #{gqa_forward.4} parent=27 // pred_check
          %p232 = pneg %p231
        $region34: #{gqa_forward.4} parent=27 // pred_check_branch
          %234 = sbr.rel (%p232) target = $region36
        $region35: #{gqa_forward.4} parent=27 // pred_region
          %235 = vst [vmem:[#allocation2] sm:$0xff] 0.0
          %236 = vst [vmem:[#allocation2 + $0x8] sm:$0xff] 0.0
          %237 = vst [vmem:[#allocation2 + $0x10] sm:$0xff] 0.0
          %238 = vst [vmem:[#allocation2 + $0x18] sm:$0xff] 0.0
        $region36: #{gqa_forward.4} parent=27 // pred_fallthru
          _
        %v239 = vld [vmem:[#allocation2] sm:$0xff]
        %v240 = vld [vmem:[#allocation2 + $0x8] sm:$0xff]
        %v241 = vld [vmem:[#allocation2 + $0x10] sm:$0xff]
        %v242 = vld [vmem:[#allocation2 + $0x18] sm:$0xff]
        %v243 = vld [vmem:[%s224] sm:$0xff]
        %v244 = vld [vmem:[%s224 + $0x8] sm:$0xff]
        %v245 = vld [vmem:[%s224 + $0x10] sm:$0xff]
        %v246 = vld [vmem:[%s224 + $0x18] sm:$0xff]
        %v247 = vld [vmem:[%s184] sm:$0xff]
        %v248 = vld [vmem:[%s184 + $0x8] sm:$0xff]
        %v249 = vld [vmem:[%s184 + $0x10] sm:$0xff]
        %v250 = vld [vmem:[%s184 + $0x18] sm:$0xff]
        %v251 = vld [vmem:[%s184 + $0x20] sm:$0xff]
        %v252 = vld [vmem:[%s184 + $0x28] sm:$0xff]
        %v253 = vld [vmem:[%s184 + $0x30] sm:$0xff]
        %v254 = vld [vmem:[%s184 + $0x38] sm:$0xff]
        %v255 = vld [vmem:[%s184 + $0x40] sm:$0xff]
        %v256 = vld [vmem:[%s184 + $0x48] sm:$0xff]
        %v257 = vld [vmem:[%s184 + $0x50] sm:$0xff]
        %v258 = vld [vmem:[%s184 + $0x58] sm:$0xff]
        %v259 = vld [vmem:[%s184 + $0x60] sm:$0xff]
        %v260 = vld [vmem:[%s184 + $0x68] sm:$0xff]
        %v261 = vld [vmem:[%s184 + $0x70] sm:$0xff]
        %v262 = vld [vmem:[%s184 + $0x78] sm:$0xff]
        %v263 = vld [vmem:[%s184 + $0x80] sm:$0xff]
        %v264 = vld [vmem:[%s184 + $0x88] sm:$0xff]
        %v265 = vld [vmem:[%s184 + $0x90] sm:$0xff]
        %v266 = vld [vmem:[%s184 + $0x98] sm:$0xff]
        %v267 = vld [vmem:[%s184 + $0xa0] sm:$0xff]
        %v268 = vld [vmem:[%s184 + $0xa8] sm:$0xff]
        %v269 = vld [vmem:[%s184 + $0xb0] sm:$0xff]
        %v270 = vld [vmem:[%s184 + $0xb8] sm:$0xff]
        %v271 = vld [vmem:[%s184 + $0xc0] sm:$0xff]
        %v272 = vld [vmem:[%s184 + $0xc8] sm:$0xff]
        %v273 = vld [vmem:[%s184 + $0xd0] sm:$0xff]
        %v274 = vld [vmem:[%s184 + $0xd8] sm:$0xff]
        %v275 = vld [vmem:[%s184 + $0xe0] sm:$0xff]
        %v276 = vld [vmem:[%s184 + $0xe8] sm:$0xff]
        %v277 = vld [vmem:[%s184 + $0xf0] sm:$0xff]
        %v278 = vld [vmem:[%s184 + $0xf8] sm:$0xff]
        %v279 = vld [vmem:[%s184 + $0x100] sm:$0xff]
        %v280 = vld [vmem:[%s184 + $0x108] sm:$0xff]
        %v281 = vld [vmem:[%s184 + $0x110] sm:$0xff]
        %v282 = vld [vmem:[%s184 + $0x118] sm:$0xff]
        %v283 = vld [vmem:[%s184 + $0x120] sm:$0xff]
        %v284 = vld [vmem:[%s184 + $0x128] sm:$0xff]
        %v285 = vld [vmem:[%s184 + $0x130] sm:$0xff]
        %v286 = vld [vmem:[%s184 + $0x138] sm:$0xff]
        %v287 = vld [vmem:[%s184 + $0x140] sm:$0xff]
        %v288 = vld [vmem:[%s184 + $0x148] sm:$0xff]
        %v289 = vld [vmem:[%s184 + $0x150] sm:$0xff]
        %v290 = vld [vmem:[%s184 + $0x158] sm:$0xff]
        %v291 = vld [vmem:[%s184 + $0x160] sm:$0xff]
        %v292 = vld [vmem:[%s184 + $0x168] sm:$0xff]
        %v293 = vld [vmem:[%s184 + $0x170] sm:$0xff]
        %v294 = vld [vmem:[%s184 + $0x178] sm:$0xff]
        %v295 = vld [vmem:[%s184 + $0x180] sm:$0xff]
        %v296 = vld [vmem:[%s184 + $0x188] sm:$0xff]
        %v297 = vld [vmem:[%s184 + $0x190] sm:$0xff]
        %v298 = vld [vmem:[%s184 + $0x198] sm:$0xff]
        %v299 = vld [vmem:[%s184 + $0x1a0] sm:$0xff]
        %v300 = vld [vmem:[%s184 + $0x1a8] sm:$0xff]
        %v301 = vld [vmem:[%s184 + $0x1b0] sm:$0xff]
        %v302 = vld [vmem:[%s184 + $0x1b8] sm:$0xff]
        %v303 = vld [vmem:[%s184 + $0x1c0] sm:$0xff]
        %v304 = vld [vmem:[%s184 + $0x1c8] sm:$0xff]
        %v305 = vld [vmem:[%s184 + $0x1d0] sm:$0xff]
        %v306 = vld [vmem:[%s184 + $0x1d8] sm:$0xff]
        %v307 = vld [vmem:[%s184 + $0x1e0] sm:$0xff]
        %v308 = vld [vmem:[%s184 + $0x1e8] sm:$0xff]
        %v309 = vld [vmem:[%s184 + $0x1f0] sm:$0xff]
        %v310 = vld [vmem:[%s184 + $0x1f8] sm:$0xff]
        %v315 = vunpack.c.l.b16 %v243
        %v316 = vunpack.c.h.b16 %v243
        %v317 = vunpack.c.l.b16 %v244
        %v318 = vunpack.c.h.b16 %v244
        %v319 = vunpack.c.l.b16 %v245
        %v320 = vunpack.c.h.b16 %v245
        %v321 = vunpack.c.l.b16 %v246
        %v322 = vunpack.c.h.b16 %v246
        %v323 = vpack.c.b16 %v319, %v315
        %v324 = vpack.c.b16 %v320, %v316
        %v325 = vpack.c.b16 %v321, %v317
        %v326 = vpack.c.b16 %v322, %v318
        %v395 = vunpack.c.l.b16 %v247
        %v396 = vunpack.c.h.b16 %v247
        %v397 = vunpack.c.l.b16 %v248
        %v398 = vunpack.c.h.b16 %v248
        %v399 = vunpack.c.l.b16 %v249
        %v400 = vunpack.c.h.b16 %v249
        %v401 = vunpack.c.l.b16 %v250
        %v402 = vunpack.c.h.b16 %v250
        %v403 = vunpack.c.l.b16 %v251
        %v404 = vunpack.c.h.b16 %v251
        %v405 = vunpack.c.l.b16 %v252
        %v406 = vunpack.c.h.b16 %v252
        %v407 = vunpack.c.l.b16 %v253
        %v408 = vunpack.c.h.b16 %v253
        %v409 = vunpack.c.l.b16 %v254
        %v410 = vunpack.c.h.b16 %v254
        %v411 = vunpack.c.l.b16 %v255
        %v412 = vunpack.c.h.b16 %v255
        %v413 = vunpack.c.l.b16 %v256
        %v414 = vunpack.c.h.b16 %v256
        %v415 = vunpack.c.l.b16 %v257
        %v416 = vunpack.c.h.b16 %v257
        %v417 = vunpack.c.l.b16 %v258
        %v418 = vunpack.c.h.b16 %v258
        %v419 = vunpack.c.l.b16 %v259
        %v420 = vunpack.c.h.b16 %v259
        %v421 = vunpack.c.l.b16 %v260
        %v422 = vunpack.c.h.b16 %v260
        %v423 = vunpack.c.l.b16 %v261
        %v424 = vunpack.c.h.b16 %v261
        %v425 = vunpack.c.l.b16 %v262
        %v426 = vunpack.c.h.b16 %v262
        %v427 = vunpack.c.l.b16 %v263
        %v428 = vunpack.c.h.b16 %v263
        %v429 = vunpack.c.l.b16 %v264
        %v430 = vunpack.c.h.b16 %v264
        %v431 = vunpack.c.l.b16 %v265
        %v432 = vunpack.c.h.b16 %v265
        %v433 = vunpack.c.l.b16 %v266
        %v434 = vunpack.c.h.b16 %v266
        %v435 = vunpack.c.l.b16 %v267
        %v436 = vunpack.c.h.b16 %v267
        %v437 = vunpack.c.l.b16 %v268
        %v438 = vunpack.c.h.b16 %v268
        %v439 = vunpack.c.l.b16 %v269
        %v440 = vunpack.c.h.b16 %v269
        %v441 = vunpack.c.l.b16 %v270
        %v442 = vunpack.c.h.b16 %v270
        %v443 = vunpack.c.l.b16 %v271
        %v444 = vunpack.c.h.b16 %v271
        %v445 = vunpack.c.l.b16 %v272
        %v446 = vunpack.c.h.b16 %v272
        %v447 = vunpack.c.l.b16 %v273
        %v448 = vunpack.c.h.b16 %v273
        %v449 = vunpack.c.l.b16 %v274
        %v450 = vunpack.c.h.b16 %v274
        %v451 = vunpack.c.l.b16 %v275
        %v452 = vunpack.c.h.b16 %v275
        %v453 = vunpack.c.l.b16 %v276
        %v454 = vunpack.c.h.b16 %v276
        %v455 = vunpack.c.l.b16 %v277
        %v456 = vunpack.c.h.b16 %v277
        %v457 = vunpack.c.l.b16 %v278
        %v458 = vunpack.c.h.b16 %v278
        %v459 = vunpack.c.l.b16 %v279
        %v460 = vunpack.c.h.b16 %v279
        %v461 = vunpack.c.l.b16 %v280
        %v462 = vunpack.c.h.b16 %v280
        %v463 = vunpack.c.l.b16 %v281
        %v464 = vunpack.c.h.b16 %v281
        %v465 = vunpack.c.l.b16 %v282
        %v466 = vunpack.c.h.b16 %v282
        %v467 = vunpack.c.l.b16 %v283
        %v468 = vunpack.c.h.b16 %v283
        %v469 = vunpack.c.l.b16 %v284
        %v470 = vunpack.c.h.b16 %v284
        %v471 = vunpack.c.l.b16 %v285
        %v472 = vunpack.c.h.b16 %v285
        %v473 = vunpack.c.l.b16 %v286
        %v474 = vunpack.c.h.b16 %v286
        %v475 = vunpack.c.l.b16 %v287
        %v476 = vunpack.c.h.b16 %v287
        %v477 = vunpack.c.l.b16 %v288
        %v478 = vunpack.c.h.b16 %v288
        %v479 = vunpack.c.l.b16 %v289
        %v480 = vunpack.c.h.b16 %v289
        %v481 = vunpack.c.l.b16 %v290
        %v482 = vunpack.c.h.b16 %v290
        %v483 = vunpack.c.l.b16 %v291
        %v484 = vunpack.c.h.b16 %v291
        %v485 = vunpack.c.l.b16 %v292
        %v486 = vunpack.c.h.b16 %v292
        %v487 = vunpack.c.l.b16 %v293
        %v488 = vunpack.c.h.b16 %v293
        %v489 = vunpack.c.l.b16 %v294
        %v490 = vunpack.c.h.b16 %v294
        %v491 = vunpack.c.l.b16 %v295
        %v492 = vunpack.c.h.b16 %v295
        %v493 = vunpack.c.l.b16 %v296
        %v494 = vunpack.c.h.b16 %v296
        %v495 = vunpack.c.l.b16 %v297
        %v496 = vunpack.c.h.b16 %v297
        %v497 = vunpack.c.l.b16 %v298
        %v498 = vunpack.c.h.b16 %v298
        %v499 = vunpack.c.l.b16 %v299
        %v500 = vunpack.c.h.b16 %v299
        %v501 = vunpack.c.l.b16 %v300
        %v502 = vunpack.c.h.b16 %v300
        %v503 = vunpack.c.l.b16 %v301
        %v504 = vunpack.c.h.b16 %v301
        %v505 = vunpack.c.l.b16 %v302
        %v506 = vunpack.c.h.b16 %v302
        %v507 = vunpack.c.l.b16 %v303
        %v508 = vunpack.c.h.b16 %v303
        %v509 = vunpack.c.l.b16 %v304
        %v510 = vunpack.c.h.b16 %v304
        %v511 = vunpack.c.l.b16 %v305
        %v512 = vunpack.c.h.b16 %v305
        %v513 = vunpack.c.l.b16 %v306
        %v514 = vunpack.c.h.b16 %v306
        %v515 = vunpack.c.l.b16 %v307
        %v516 = vunpack.c.h.b16 %v307
        %v517 = vunpack.c.l.b16 %v308
        %v518 = vunpack.c.h.b16 %v308
        %v519 = vunpack.c.l.b16 %v309
        %v520 = vunpack.c.h.b16 %v309
        %v521 = vunpack.c.l.b16 %v310
        %v522 = vunpack.c.h.b16 %v310
        %v523 = vpack.c.b16 %v397, %v395
        %v524 = vpack.c.b16 %v398, %v396
        %v525 = vpack.c.b16 %v401, %v399
        %v526 = vpack.c.b16 %v402, %v400
        %v527 = vpack.c.b16 %v405, %v403
        %v528 = vpack.c.b16 %v406, %v404
        %v529 = vpack.c.b16 %v409, %v407
        %v530 = vpack.c.b16 %v410, %v408
        %v531 = vpack.c.b16 %v413, %v411
        %v532 = vpack.c.b16 %v414, %v412
        %v533 = vpack.c.b16 %v417, %v415
        %v534 = vpack.c.b16 %v418, %v416
        %v535 = vpack.c.b16 %v421, %v419
        %v536 = vpack.c.b16 %v422, %v420
        %v537 = vpack.c.b16 %v425, %v423
        %v538 = vpack.c.b16 %v426, %v424
        %v539 = vpack.c.b16 %v429, %v427
        %v540 = vpack.c.b16 %v430, %v428
        %v541 = vpack.c.b16 %v433, %v431
        %v542 = vpack.c.b16 %v434, %v432
        %v543 = vpack.c.b16 %v437, %v435
        %v544 = vpack.c.b16 %v438, %v436
        %v545 = vpack.c.b16 %v441, %v439
        %v546 = vpack.c.b16 %v442, %v440
        %v547 = vpack.c.b16 %v445, %v443
        %v548 = vpack.c.b16 %v446, %v444
        %v549 = vpack.c.b16 %v449, %v447
        %v550 = vpack.c.b16 %v450, %v448
        %v551 = vpack.c.b16 %v453, %v451
        %v552 = vpack.c.b16 %v454, %v452
        %v553 = vpack.c.b16 %v457, %v455
        %v554 = vpack.c.b16 %v458, %v456
        %v555 = vpack.c.b16 %v461, %v459
        %v556 = vpack.c.b16 %v462, %v460
        %v557 = vpack.c.b16 %v465, %v463
        %v558 = vpack.c.b16 %v466, %v464
        %v559 = vpack.c.b16 %v469, %v467
        %v560 = vpack.c.b16 %v470, %v468
        %v561 = vpack.c.b16 %v473, %v471
        %v562 = vpack.c.b16 %v474, %v472
        %v563 = vpack.c.b16 %v477, %v475
        %v564 = vpack.c.b16 %v478, %v476
        %v565 = vpack.c.b16 %v481, %v479
        %v566 = vpack.c.b16 %v482, %v480
        %v567 = vpack.c.b16 %v485, %v483
        %v568 = vpack.c.b16 %v486, %v484
        %v569 = vpack.c.b16 %v489, %v487
        %v570 = vpack.c.b16 %v490, %v488
        %v571 = vpack.c.b16 %v493, %v491
        %v572 = vpack.c.b16 %v494, %v492
        %v573 = vpack.c.b16 %v497, %v495
        %v574 = vpack.c.b16 %v498, %v496
        %v575 = vpack.c.b16 %v501, %v499
        %v576 = vpack.c.b16 %v502, %v500
        %v577 = vpack.c.b16 %v505, %v503
        %v578 = vpack.c.b16 %v506, %v504
        %v579 = vpack.c.b16 %v509, %v507
        %v580 = vpack.c.b16 %v510, %v508
        %v581 = vpack.c.b16 %v513, %v511
        %v582 = vpack.c.b16 %v514, %v512
        %v583 = vpack.c.b16 %v517, %v515
        %v584 = vpack.c.b16 %v518, %v516
        %v585 = vpack.c.b16 %v521, %v519
        %v586 = vpack.c.b16 %v522, %v520
        %651 = vmatpush.bf16.msra.mxu0 %v537
        %652 = vmatpush.bf16.msra.mxu0 %v535
        %653 = vmatpush.bf16.msra.mxu0 %v533
        %654 = vmatpush.bf16.msra.mxu0 %v531
        %655 = vmatpush.bf16.msra.mxu0 %v529
        %656 = vmatpush.bf16.msra.mxu0 %v527
        %657 = vmatpush.bf16.msra.mxu0 %v525
        %658 = vmatpush.bf16.msra.mxu0 %v523
        %659 = vmatmul.bf16.gmra.mxu0 %v323
        %v660 = vpop.f32.mrf.mxu0
        %v661 = vadd.f32 0.0, %v660
        %v662 = vpop.f32.mrf.mxu0
        %v663 = vadd.f32 0.0, %v662
        %664 = vdwg.mxu0
        %665 = vmatpush.bf16.msra.mxu0 %v553
        %666 = vmatpush.bf16.msra.mxu0 %v551
        %667 = vmatpush.bf16.msra.mxu0 %v549
        %668 = vmatpush.bf16.msra.mxu0 %v547
        %669 = vmatpush.bf16.msra.mxu0 %v545
        %670 = vmatpush.bf16.msra.mxu0 %v543
        %671 = vmatpush.bf16.msra.mxu0 %v541
        %672 = vmatpush.bf16.msra.mxu0 %v539
        %673 = vmatmul.bf16.gmra.mxu0 %v324
        %v674 = vpop.f32.mrf.mxu0
        %v675 = vadd.f32 %v661, %v674
        %v676 = vpop.f32.mrf.mxu0
        %v677 = vadd.f32 %v663, %v676
        %678 = vdwg.mxu0
        %679 = vmatpush.bf16.msra.mxu0 %v569
        %680 = vmatpush.bf16.msra.mxu0 %v567
        %681 = vmatpush.bf16.msra.mxu0 %v565
        %682 = vmatpush.bf16.msra.mxu0 %v563
        %683 = vmatpush.bf16.msra.mxu0 %v561
        %684 = vmatpush.bf16.msra.mxu0 %v559
        %685 = vmatpush.bf16.msra.mxu0 %v557
        %686 = vmatpush.bf16.msra.mxu0 %v555
        %687 = vmatmul.bf16.gmra.mxu0 %v325
        %v688 = vpop.f32.mrf.mxu0
        %v689 = vadd.f32 %v675, %v688
        %v690 = vpop.f32.mrf.mxu0
        %v691 = vadd.f32 %v677, %v690
        %692 = vdwg.mxu0
        %693 = vmatpush.bf16.msra.mxu0 %v585
        %694 = vmatpush.bf16.msra.mxu0 %v583
        %695 = vmatpush.bf16.msra.mxu0 %v581
        %696 = vmatpush.bf16.msra.mxu0 %v579
        %697 = vmatpush.bf16.msra.mxu0 %v577
        %698 = vmatpush.bf16.msra.mxu0 %v575
        %699 = vmatpush.bf16.msra.mxu0 %v573
        %700 = vmatpush.bf16.msra.mxu0 %v571
        %701 = vmatmul.bf16.gmra.mxu0 %v326
        %v702 = vpop.f32.mrf.mxu0
        %v703 = vadd.f32 %v689, %v702
        %v704 = vpop.f32.mrf.mxu0
        %v705 = vadd.f32 %v691, %v704
        %706 = vdwg.mxu0
        %707 = vmatpush.bf16.msra.mxu0 %v538
        %708 = vmatpush.bf16.msra.mxu0 %v536
        %709 = vmatpush.bf16.msra.mxu0 %v534
        %710 = vmatpush.bf16.msra.mxu0 %v532
        %711 = vmatpush.bf16.msra.mxu0 %v530
        %712 = vmatpush.bf16.msra.mxu0 %v528
        %713 = vmatpush.bf16.msra.mxu0 %v526
        %714 = vmatpush.bf16.msra.mxu0 %v524
        %715 = vmatmul.bf16.gmra.mxu0 %v323
        %v716 = vpop.f32.mrf.mxu0
        %v717 = vadd.f32 0.0, %v716
        %v718 = vpop.f32.mrf.mxu0
        %v719 = vadd.f32 0.0, %v718
        %720 = vdwg.mxu0
        %721 = vmatpush.bf16.msra.mxu0 %v554
        %722 = vmatpush.bf16.msra.mxu0 %v552
        %723 = vmatpush.bf16.msra.mxu0 %v550
        %724 = vmatpush.bf16.msra.mxu0 %v548
        %725 = vmatpush.bf16.msra.mxu0 %v546
        %726 = vmatpush.bf16.msra.mxu0 %v544
        %727 = vmatpush.bf16.msra.mxu0 %v542
        %728 = vmatpush.bf16.msra.mxu0 %v540
        %729 = vmatmul.bf16.gmra.mxu0 %v324
        %v730 = vpop.f32.mrf.mxu0
        %v731 = vadd.f32 %v717, %v730
        %v732 = vpop.f32.mrf.mxu0
        %v733 = vadd.f32 %v719, %v732
        %734 = vdwg.mxu0
        %735 = vmatpush.bf16.msra.mxu0 %v570
        %736 = vmatpush.bf16.msra.mxu0 %v568
        %737 = vmatpush.bf16.msra.mxu0 %v566
        %738 = vmatpush.bf16.msra.mxu0 %v564
        %739 = vmatpush.bf16.msra.mxu0 %v562
        %740 = vmatpush.bf16.msra.mxu0 %v560
        %741 = vmatpush.bf16.msra.mxu0 %v558
        %742 = vmatpush.bf16.msra.mxu0 %v556
        %743 = vmatmul.bf16.gmra.mxu0 %v325
        %v744 = vpop.f32.mrf.mxu0
        %v745 = vadd.f32 %v731, %v744
        %v746 = vpop.f32.mrf.mxu0
        %v747 = vadd.f32 %v733, %v746
        %748 = vdwg.mxu0
        %749 = vmatpush.bf16.msra.mxu0 %v586
        %750 = vmatpush.bf16.msra.mxu0 %v584
        %751 = vmatpush.bf16.msra.mxu0 %v582
        %752 = vmatpush.bf16.msra.mxu0 %v580
        %753 = vmatpush.bf16.msra.mxu0 %v578
        %754 = vmatpush.bf16.msra.mxu0 %v576
        %755 = vmatpush.bf16.msra.mxu0 %v574
        %756 = vmatpush.bf16.msra.mxu0 %v572
        %757 = vmatmul.bf16.gmra.mxu0 %v326
        %v758 = vpop.f32.mrf.mxu0
        %v759 = vadd.f32 %v745, %v758
        %v760 = vpop.f32.mrf.mxu0
        %v761 = vadd.f32 %v747, %v760
        %762 = vdwg.mxu0
        %v763 = vadd.f32 %v239, %v703
        %v764 = vadd.f32 %v240, %v759
        %v765 = vadd.f32 %v241, %v705
        %v766 = vadd.f32 %v242, %v761
        %767 = vst [vmem:[#allocation2] sm:$0xff] %v763
        %768 = vst [vmem:[#allocation2 + $0x8] sm:$0xff] %v764
        %769 = vst [vmem:[#allocation2 + $0x10] sm:$0xff] %v765
        %770 = vst [vmem:[#allocation2 + $0x18] sm:$0xff] %v766
        // Predicated region
        $region37: #{gqa_forward.4} parent=27 // pred_check
          %p771 = pneg %p231
        $region38: #{gqa_forward.4} parent=27 // pred_check_branch
          %773 = sbr.rel (%p771) target = $region40
        $region39: #{gqa_forward.4} parent=27 // pred_region
          %v774 = vld [vmem:[#allocation2] sm:$0xff]
          %v775 = vld [vmem:[#allocation2 + $0x8] sm:$0xff]
          %v776 = vld [vmem:[#allocation2 + $0x10] sm:$0xff]
          %v777 = vld [vmem:[#allocation2 + $0x18] sm:$0xff]
          %v778 = vpack.c.bf16 %v775, %v774
          %v779 = vpack.c.bf16 %v777, %v776
          %780 = vst [vmem:[%s214] sm:$0xff] %v778
          %781 = vst [vmem:[%s214 + $0x8] sm:$0xff] %v779
        $region40: #{gqa_forward.4} parent=27 // pred_fallthru
          _
        %s782 = sand.u32 %s101, 1
        %s783 = sand.u32 %s101, 1
        %s784 = smul.addr %s783, 16
        %s785 = scalar_lea.vmem [#allocation5], %s784
        // Predicated region
        $region41: #{gqa_forward.4} parent=27 // pred_check
          %p786 = pneg %p111
        $region42: #{gqa_forward.4} parent=27 // pred_check_branch
          %788 = sbr.rel (%p786) target = $region44
        $region43: #{gqa_forward.4} parent=27 // pred_region
          %s789 = smul.u32 2, %s21
          %s790 = smul.u32 2, %s22
          %s791 = smul.addr %s789, 4
          %s792 = sadd.s32 %s790, %s791
          %s793 = smul.addr %s792, 4
          %s794 = scalar_lea.vmem %s2, %s793
          // Predicated region
          $region45: #{gqa_forward.4} parent=43 // pred_check
            _
          $region46: #{gqa_forward.4} parent=43 // pred_check_branch
            %796 = sbr.rel (0) target = $region48
          $region47: #{gqa_forward.4} parent=43 // pred_region
            // Predicated region
            $region49: #{gqa_forward.4} parent=47 // pred_check
              _
            $region50: #{gqa_forward.4} parent=47 // pred_check_branch
              %798 = sbr.rel (0) target = $region52
            $region51: #{gqa_forward.4} parent=47 // pred_region
              // Predicated region
              $region64: #{gqa_forward.4} parent=51 // pred_check
                _
              $region65: #{gqa_forward.4} parent=51 // pred_check_branch
                %816 = sbr.rel (0) target = $region67
              $region66: #{gqa_forward.4} parent=51 // pred_region
                loop: start=0, step=1, limit=1
                $region68: #{gqa_forward.4} parent=66 // loop_pre_header
                  _
                $region69: #{gqa_forward.4} parent=66 // loop_header
                  %s818 = sphi 0, %s822
                  %p819 = scmp.ge.s32.totalorder %s818, 1
                  %s823 = sphi %s785, %s785
                  %s824 = sphi %s794, %s794
                $region70: #{gqa_forward.4} parent=66 // loop_header_branch
                  %821 = sbr.rel (%p819) target = $region74
                $region71: #{gqa_forward.4} parent=66 // loop_body
                  %v825 = vld [vmem:[%s823] sm:$0xff]
                  %826 = vst [vmem:[%s824] sm:$0xff] %v825
                  %v827 = vld [vmem:[%s823 + $0x8] sm:$0xff]
                  %828 = vst [vmem:[%s824 + $0x10] sm:$0xff] %v827
                $region72: #{gqa_forward.4} parent=66 // loop_footer
                  %s822 = sadd.s32 1, %s818
                $region73: #{gqa_forward.4} parent=66 // loop_footer_branch
                  %817 = sbr.rel target = $region69
                $region74: #{gqa_forward.4} parent=66 // loop_exit
                  _
              $region67: #{gqa_forward.4} parent=51 // pred_fallthru
                _
              // Predicated region
              $region75: #{gqa_forward.4} parent=51 // pred_check
                _
              $region76: #{gqa_forward.4} parent=51 // pred_check_branch
                %830 = sbr.rel target = $region78
              $region77: #{gqa_forward.4} parent=51 // pred_region
                _
              $region78: #{gqa_forward.4} parent=51 // pred_fallthru
                _
            $region52: #{gqa_forward.4} parent=47 // pred_fallthru
              _
            // Predicated region
            $region53: #{gqa_forward.4} parent=47 // pred_check
              _
            $region54: #{gqa_forward.4} parent=47 // pred_check_branch
              %800 = sbr.rel target = $region56
            $region55: #{gqa_forward.4} parent=47 // pred_region
              %s802 = ssub.s32 256, 1
              loop: start=0, step=1, limit=1
              $region57: #{gqa_forward.4} parent=55 // loop_pre_header
                _
              $region58: #{gqa_forward.4} parent=55 // loop_header
                %s804 = sphi 0, %s808
                %p805 = scmp.ge.s32.totalorder %s804, 1
                %s809 = sphi %s785, %s785
                %s810 = sphi %s794, %s794
              $region59: #{gqa_forward.4} parent=55 // loop_header_branch
                %807 = sbr.rel (%p805) target = $region63
              $region60: #{gqa_forward.4} parent=55 // loop_body
                %v811 = vld [vmem:[%s809] sm:%s802]
                %812 = vst [vmem:[%s810] sm:%s802] %v811
                %v813 = vld [vmem:[%s809 + $0x8] sm:%s802]
                %814 = vst [vmem:[%s810 + $0x10] sm:%s802] %v813
              $region61: #{gqa_forward.4} parent=55 // loop_footer
                %s808 = sadd.s32 1, %s804
              $region62: #{gqa_forward.4} parent=55 // loop_footer_branch
                %803 = sbr.rel target = $region58
              $region63: #{gqa_forward.4} parent=55 // loop_exit
                _
            $region56: #{gqa_forward.4} parent=47 // pred_fallthru
              _
          $region48: #{gqa_forward.4} parent=43 // pred_fallthru
            _
          %831 = vnop
        $region44: #{gqa_forward.4} parent=27 // pred_fallthru
          _
      $region28: #{gqa_forward.4} parent=5 // pred_fallthru
        _
      %p832 = scmp.le.s32.totalorder 2, %s11
      // Predicated region
      $region79: #{gqa_forward.4} parent=5 // pred_check
        %p833 = pneg %p832
      $region80: #{gqa_forward.4} parent=5 // pred_check_branch
        %835 = sbr.rel (%p833) target = $region82
      $region81: #{gqa_forward.4} parent=5 // pred_region
        %s836 = ssub.s32 %s11, 2
        // Predicated region
        $region83: #{gqa_forward.4} parent=81 // pred_check
          %p837 = pneg %p117
        $region84: #{gqa_forward.4} parent=81 // pred_check_branch
          %839 = sbr.rel (%p837) target = $region86
        $region85: #{gqa_forward.4} parent=81 // pred_region
          %s840 = sand.u32 %s102, 1
          %s841 = sand.u32 %s102, 1
          %s842 = smul.addr %s841, 16
          %s843 = scalar_lea.vmem [#allocation5], %s842
        $region86: #{gqa_forward.4} parent=81 // pred_fallthru
          _
      $region82: #{gqa_forward.4} parent=5 // pred_fallthru
        _
    $region6: #{gqa_forward.4} parent=1 // loop_footer
      %s15 = sadd.s32 1, %s11
    $region7: #{gqa_forward.4} parent=1 // loop_footer_branch
      %10 = sbr.rel target = $region3
    $region8: #{gqa_forward.4} parent=1 // loop_exit
      _
    %844 = vsyncpa [#allocation4], 1
    %s845 = scalar_lea.sflag [#allocation4], 1
    %846 = vsyncpa %s845, 1

</llo_original>
